<compile_context>
chip_gen: v7x
topology: tpu7x:2x2x1
jax: 0.10.0
libtpu: 0.0.40
codegen_flags: <defaults>
</compile_context>

<pallas_src>
import math

import jax
import jax.numpy as jnp
from jax.experimental import pallas as pl
from jax.experimental.pallas import tpu as pltpu

# ---------------- synthetic "DINO ViT" config (small) ----------------
IMG      = 16     # image spatial size
PATCH    = 8      # patch size (conv kernel = stride = PATCH)
CHANNELS = 3      # RGB
HIDDEN   = 32     # hidden size D
HEADS    = 2      # attention heads
LAYERS   = 2      # transformer layers
MLP      = 4 * HIDDEN
EPS      = 1e-12  # HF ViT layer_norm_eps

N_PATCH = (IMG // PATCH) ** 2          # 4
TOKENS  = 1 + N_PATCH                  # [CLS] + patches = 5
K_PATCH = CHANNELS * PATCH * PATCH     # 192, (C, P, P) flattening order
DH      = HIDDEN // HEADS              # 16
SCALE   = 1.0 / math.sqrt(DH)


def _round_up(x, m):
    return ((x + m - 1) // m) * m


DP     = _round_up(HIDDEN, 128)        # 128  lane-padded hidden
MLPP   = _round_up(MLP, 128)           # 128  lane-padded MLP hidden
DHP    = DP // HEADS                   # 64   lane-aligned per-head chunk
KP_PAD = _round_up(K_PATCH, 128)       # 256  lane-padded patch length
TP     = _round_up(TOKENS, 8)          # 8    sublane-aligned tokens per image
VW     = max(DP, MLPP)                 # packed bias/LN vector width
N_VEC  = 10                            # rows in per-layer vector bundle
NEG    = -1e30                         # softmax mask value (finite, exp -> 0)

IMAGENET_MEAN = jnp.array([0.485, 0.456, 0.406], jnp.float32)
IMAGENET_STD  = jnp.array([0.229, 0.224, 0.225], jnp.float32)


# ---------------- in-kernel helpers ----------------
def _gelu(x):
    # TODO(synk): HF ViT uses exact erf-GELU; tanh approximation used here.
    return 0.5 * x * (1.0 + jnp.tanh(0.7978845608028654 * (x + 0.044715 * x * x * x)))


# ---------------- fused forward kernel (grid = (LAYERS,)) ----------------
def fused_vit_kernel(patches_ref, tokbias_ref, mask_ref, wpe_ref, wqkv_ref,
                     wo_ref, w1_ref, w2_ref, vec_ref, lnf_ref, o_ref, x_ref):
    li = pl.program_id(0)

    # lane mask for the real hidden dims (padded lanes of x stay exactly zero)
    lane  = jax.lax.broadcasted_iota(jnp.int32, (1, DP), 1)
    dmask = (lane < HIDDEN).astype(jnp.float32)
    inv_d = 1.0 / HIDDEN

    def layernorm(x, g, b):
        # padded lanes of x are zero -> sums over the padded axis are exact.
        mu  = jnp.sum(x, axis=-1, keepdims=True) * inv_d
        xc  = (x - mu) * dmask
        var = jnp.sum(xc * xc, axis=-1, keepdims=True) * inv_d
        return xc * jax.lax.rsqrt(var + EPS) * g + b

    # per-head lane masks: head h occupies lanes [h*DHP, (h+1)*DHP)
    head_masks = [((lane >= h * DHP) & (lane < (h + 1) * DHP)).astype(jnp.float32)
                  for h in range(HEADS)]

    # ---- layer 0: patch embedding (ImageNet normalization folded into wpe)
    #      + CLS/pos/conv-bias table -> one matmul + one VPU add ----
    @pl.when(li == 0)
    def _():
        pe = jnp.dot(patches_ref[...], wpe_ref[...],
                     preferred_element_type=jnp.float32)          # (B*TP, DP)
        x_ref[...] = pe + tokbias_ref[...]

    x = x_ref[...]                                                # (B*TP, DP) f32

    v = vec_ref[...]                                              # (N_VEC, VW) f32
    ln1g, ln1b = v[0:1, :DP], v[1:2, :DP]
    bq, bk, bv = v[2:3, :DP], v[3:4, :DP], v[4:5, :DP]
    bo         = v[5:6, :DP]
    ln2g, ln2b = v[6:7, :DP], v[7:8, :DP]
    b1, b2     = v[8:9, :MLPP], v[9:10, :DP]

    # --- self-attention (pre-LN), fused QKV projection, head-masked scores ---
    h = layernorm(x, ln1g, ln1b)
    qkv = jnp.dot(h.astype(jnp.bfloat16), wqkv_ref[...],
                  preferred_element_type=jnp.float32)             # (B*TP, 3*DP)
    q  = qkv[:, 0 * DP:1 * DP] + bq
    k  = qkv[:, 1 * DP:2 * DP] + bk
    vv = qkv[:, 2 * DP:3 * DP] + bv

    q_bf  = q.astype(jnp.bfloat16)
    amask = mask_ref[...]                                         # (B*TP, B*TP)

    ctx = None
    for hm in head_masks:
        kh = (k * hm).astype(jnp.bfloat16)                        # zero other head's lanes
        s = jax.lax.dot_general(q_bf, kh, (((1,), (1,)), ((), ())),
                                preferred_element_type=jnp.float32) * SCALE
        s = s + amask                                             # batch + pad mask
        s = s - jnp.max(s, axis=-1, keepdims=True)
        p = jnp.exp(s)
        p = p / jnp.sum(p, axis=-1, keepdims=True)                # exact softmax
        vh = (vv * hm).astype(jnp.bfloat16)                       # head lands in own lanes
        c = jnp.dot(p.astype(jnp.bfloat16), vh,
                    preferred_element_type=jnp.float32)
        ctx = c if ctx is None else ctx + c                       # (B*TP, DP)

    attn = jnp.dot(ctx.astype(jnp.bfloat16), wo_ref[...],
                   preferred_element_type=jnp.float32) + bo
    x = x + attn

    # --- MLP (pre-LN) ---
    h2 = layernorm(x, ln2g, ln2b)
    m = jnp.dot(h2.astype(jnp.bfloat16), w1_ref[...],
                preferred_element_type=jnp.float32) + b1
    m = _gelu(m)
    m = jnp.dot(m.astype(jnp.bfloat16), w2_ref[...],
                preferred_element_type=jnp.float32) + b2
    x = x + m
    x_ref[...] = x

    # ---- final LayerNorm -> lane-dense (B*TP, DP) output ----
    @pl.when(li == LAYERS - 1)
    def _():
        lnf = lnf_ref[...]
        o_ref[...] = layernorm(x, lnf[0:1], lnf[1:2])


# ---------------- host-side input prep & pallas_call wrapper ----------------
def _const_spec(shape):
    zeros = (0,) * len(shape)
    return pl.BlockSpec(shape, lambda l, _z=zeros: _z)


def _patchify_padded(images):
    """(B, C, H, W) -> (B*TP, KP_PAD) bf16; row 0 of each image's slab reserved
    for CLS (zeros), rows 1..N_PATCH are patches flattened in (C, P, P) order
    (matches torch.nn.Conv2d with kernel=stride=PATCH), tail rows zero."""
    B, C, H, W = images.shape
    gh, gw = H // PATCH, W // PATCH
    x = images.astype(jnp.float32).reshape(B, C, gh, PATCH, gw, PATCH)
    x = x.transpose(0, 2, 4, 1, 3, 5).reshape(B, gh * gw, C * PATCH * PATCH)
    slab = jnp.zeros((B, TP, KP_PAD), jnp.float32)
    slab = slab.at[:, 1:1 + N_PATCH, :K_PATCH].set(x)
    return slab.reshape(B * TP, KP_PAD).astype(jnp.bfloat16)


def _attention_mask(B):
    """(B*TP, B*TP): 0 where key j is a real token of the same image as query i,
    -1e30 otherwise (cross-image and padded-token keys masked)."""
    idx = jnp.arange(B * TP)
    same_img  = (idx[:, None] // TP) == (idx[None, :] // TP)
    valid_key = (idx[None, :] % TP) < TOKENS
    return jnp.where(same_img & valid_key, 0.0, NEG).astype(jnp.float32)


def dino_forward(images, pk):
    """DINOImageEncoder.forward: preprocess -> ViT encoder -> last_hidden_state."""
    # TODO(synk): the AutoImageProcessor resize-to-224 / center-crop step is
    # omitted; only the per-channel ImageNet normalization is faithful (folded
    # into the packed patch-embed weights), and the model runs at the small
    # test resolution directly.
    B = images.shape[0]
    BT = B * TP

    patches  = _patchify_padded(images)                 # (B*TP, KP_PAD) bf16
    tok_bias = jnp.tile(pk["tok_bias"], (B, 1))         # (B*TP, DP) f32
    amask    = _attention_mask(B)                       # (B*TP, B*TP) f32

    out = pl.pallas_call(
        fused_vit_kernel,
        out_shape=jax.ShapeDtypeStruct((BT, DP), jnp.float32),
        grid=(LAYERS,),
        in_specs=[
            _const_spec((BT, KP_PAD)),                                # patches
            _const_spec((BT, DP)),                                    # tok_bias
            _const_spec((BT, BT)),                                    # attention mask
            _const_spec((KP_PAD, DP)),                                # patch-embed weight
            pl.BlockSpec((None, DP, 3 * DP), lambda l: (l, 0, 0)),    # fused QKV (layer l)
            pl.BlockSpec((None, DP, DP),     lambda l: (l, 0, 0)),    # out proj   (layer l)
            pl.BlockSpec((None, DP, MLPP),   lambda l: (l, 0, 0)),    # MLP in     (layer l)
            pl.BlockSpec((None, MLPP, DP),   lambda l: (l, 0, 0)),    # MLP out    (layer l)
            pl.BlockSpec((None, N_VEC, VW),  lambda l: (l, 0, 0)),    # LN/bias vectors
            _const_spec((2, DP)),                                     # final LN gamma/beta
        ],
        out_specs=_const_spec((BT, DP)),
        scratch_shapes=[pltpu.VMEM((BT, DP), jnp.float32)],           # resident activation
        compiler_params=pltpu.CompilerParams(
            dimension_semantics=("arbitrary",)),
    )(patches, tok_bias, amask, pk["wpe"], pk["wqkv"], pk["wo"],
      pk["w1"], pk["w2"], pk["vec"], pk["lnf"])

    # Slice back from the lane/row-padded slab only at the very end.  (If the
    # downstream consumer accepts the padded slab, return `out` directly.)
    return out.reshape(B, TP, DP)[:, :TOKENS, :HIDDEN]


# ---------------- logical params + host-side packing ----------------
def init_params(key):
    ks = jax.random.split(key, 8 + LAYERS)
    std = 0.02
    params = {
        # Conv2d weight (D, C, P, P) flattened & transposed to (C*P*P, D)
        "patch_w": std * jax.random.normal(ks[0], (K_PATCH, HIDDEN), jnp.float32),
        "patch_b": jnp.zeros((1, HIDDEN), jnp.float32),
        "cls":     std * jax.random.normal(ks[1], (1, 1, HIDDEN), jnp.float32),
        "pos":     std * jax.random.normal(ks[2], (1, TOKENS, HIDDEN), jnp.float32),
        "ln_g":    jnp.ones((1, HIDDEN), jnp.float32),
        "ln_b":    jnp.zeros((1, HIDDEN), jnp.float32),
        "layers":  [],
    }
    for li in range(LAYERS):
        lk = jax.random.split(ks[8 + li], 6)
        params["layers"].append({
            "ln1_g": jnp.ones((1, HIDDEN), jnp.float32),
            "ln1_b": jnp.zeros((1, HIDDEN), jnp.float32),
            "wq": std * jax.random.normal(lk[0], (HIDDEN, HIDDEN), jnp.float32),
            "bq": jnp.zeros((1, HIDDEN), jnp.float32),
            "wk": std * jax.random.normal(lk[1], (HIDDEN, HIDDEN), jnp.float32),
            "bk": jnp.zeros((1, HIDDEN), jnp.float32),
            "wv": std * jax.random.normal(lk[2], (HIDDEN, HIDDEN), jnp.float32),
            "bv": jnp.zeros((1, HIDDEN), jnp.float32),
            "wo": std * jax.random.normal(lk[3], (HIDDEN, HIDDEN), jnp.float32),
            "bo": jnp.zeros((1, HIDDEN), jnp.float32),
            "ln2_g": jnp.ones((1, HIDDEN), jnp.float32),
            "ln2_b": jnp.zeros((1, HIDDEN), jnp.float32),
            "w1": std * jax.random.normal(lk[4], (HIDDEN, MLP), jnp.float32),
            "b1": jnp.zeros((1, MLP), jnp.float32),
            "w2": std * jax.random.normal(lk[5], (MLP, HIDDEN), jnp.float32),
            "b2": jnp.zeros((1, HIDDEN), jnp.float32),
        })
    return params


def pack_params(p):
    """One-time host-side packing: fold ImageNet normalization, pad to 128
    lanes / 8-row token slabs, head-pack attention weights, stack layers, and
    pack bias/LN vectors.  Padded rows/cols are zero so the in-kernel
    LayerNorm/padding invariants hold."""
    # Fold (x - mean) / std into the patch-embedding linear layer.
    std_k  = jnp.repeat(IMAGENET_STD, PATCH * PATCH)             # (K_PATCH,)
    mean_k = jnp.repeat(IMAGENET_MEAN, PATCH * PATCH)
    w_fold = p["patch_w"] / std_k[:, None]                       # (K_PATCH, D)
    b_fold = p["patch_b"][0] - (mean_k / std_k) @ p["patch_w"]   # (D,)

    wpe = jnp.zeros((KP_PAD, DP), jnp.float32).at[:K_PATCH, :HIDDEN].set(w_fold)

    # per-image token-bias slab: row 0 = CLS + pos[0]; rows 1..N = pos + conv bias;
    # tail rows (padding tokens) stay exactly zero.
    tok = jnp.zeros((TP, DP), jnp.float32)
    tok = tok.at[0, :HIDDEN].set(p["cls"][0, 0] + p["pos"][0, 0])
    tok = tok.at[1:1 + N_PATCH, :HIDDEN].set(p["pos"][0, 1:] + b_fold[None, :])

    def head_cols(w):   # (D, D) -> (DP, DP); head h's output dims at lanes h*DHP..
        out = jnp.zeros((DP, DP), jnp.float32)
        for h in range(HEADS):
            out = out.at[:HIDDEN, h * DHP:h * DHP + DH].set(w[:, h * DH:(h + 1) * DH])
        return out

    def head_rows(w):   # (D, D) -> (DP, DP); head h's input dims at rows h*DHP..
        out = jnp.zeros((DP, DP), jnp.float32)
        for h in range(HEADS):
            out = out.at[h * DHP:h * DHP + DH, :HIDDEN].set(w[h * DH:(h + 1) * DH, :])
        return out

    def head_vec(b):
        out = jnp.zeros((VW,), jnp.float32)
        for h in range(HEADS):
            out = out.at[h * DHP:h * DHP + DH].set(b[h * DH:(h + 1) * DH])
        return out

    def padvec(b):
        return jnp.zeros((VW,), jnp.float32).at[:b.shape[0]].set(b)

    wqkv, wo, w1, w2, vec = [], [], [], [], []
    for lp in p["layers"]:
        wqkv.append(jnp.concatenate(
            [head_cols(lp["wq"]), head_cols(lp["wk"]), head_cols(lp["wv"])], axis=1))
        wo.append(head_rows(lp["wo"]))
        w1.append(jnp.zeros((DP, MLPP), jnp.float32).at[:HIDDEN, :MLP].set(lp["w1"]))
        w2.append(jnp.zeros((MLPP, DP), jnp.float32).at[:MLP, :HIDDEN].set(lp["w2"]))
        vec.append(jnp.stack([
            padvec(lp["ln1_g"][0]), padvec(lp["ln1_b"][0]),
            head_vec(lp["bq"][0]), head_vec(lp["bk"][0]), head_vec(lp["bv"][0]),
            padvec(lp["bo"][0]),
            padvec(lp["ln2_g"][0]), padvec(lp["ln2_b"][0]),
            padvec(lp["b1"][0]), padvec(lp["b2"][0]),
        ]))

    lnf = jnp.zeros((2, DP), jnp.float32)
    lnf = lnf.at[0, :HIDDEN].set(p["ln_g"][0])
    lnf = lnf.at[1, :HIDDEN].set(p["ln_b"][0])

    return {
        "tok_bias": tok,                                   # (TP, DP) f32
        "wpe":  wpe.astype(jnp.bfloat16),                  # (KP_PAD, DP)
        "wqkv": jnp.stack(wqkv).astype(jnp.bfloat16),      # (LAYERS, DP, 3*DP)
        "wo":   jnp.stack(wo).astype(jnp.bfloat16),        # (LAYERS, DP, DP)
        "w1":   jnp.stack(w1).astype(jnp.bfloat16),        # (LAYERS, DP, MLPP)
        "w2":   jnp.stack(w2).astype(jnp.bfloat16),        # (LAYERS, MLPP, DP)
        "vec":  jnp.stack(vec),                            # (LAYERS, N_VEC, VW) f32
        "lnf":  lnf,                                       # (2, DP) f32
    }


if __name__ == "__main__":
    key = jax.random.PRNGKey(0)
    k_img, k_par = jax.random.split(key)
    # images: NCHW, values in [0, 1] like pixel data after ToTensor
    images = jax.random.uniform(k_img, (2, CHANNELS, IMG, IMG), jnp.float32)
    params = init_params(k_par)
    packed = pack_params(params)

    fwd = jax.jit(dino_forward)
    out = fwd(images, packed)                  # (B, 1 + N_PATCH, HIDDEN)
    jax.block_until_ready(out)
    assert out.shape == (2, TOKENS, HIDDEN)
    print("KERNEL_OK")
</pallas_src>

<mosaic_0001>
module attributes {stable_mosaic.version = 11 : i64} {
  func.func @fused_vit_kernel(%arg0: i32, %arg1: memref<16x256xbf16, #tpu.memory_space<vmem>>, %arg2: memref<16x128xf32, #tpu.memory_space<vmem>>, %arg3: memref<16x16xf32, #tpu.memory_space<vmem>>, %arg4: memref<256x128xbf16, #tpu.memory_space<vmem>>, %arg5: memref<1x128x384xbf16, #tpu.memory_space<vmem>>, %arg6: memref<1x128x128xbf16, #tpu.memory_space<vmem>>, %arg7: memref<1x128x128xbf16, #tpu.memory_space<vmem>>, %arg8: memref<1x128x128xbf16, #tpu.memory_space<vmem>>, %arg9: memref<1x10x128xf32, #tpu.memory_space<vmem>>, %arg10: memref<2x128xf32, #tpu.memory_space<vmem>>, %arg11: memref<16x128xf32, #tpu.memory_space<vmem>>, %arg12: memref<16x128xf32, #tpu.memory_space<vmem>>) attributes {dimension_semantics = [#tpu.dimension_semantics<arbitrary>], iteration_bounds = array<i64: 2>, scalar_prefetch = 0 : i64, scratch_operands = 1 : i64, tpu.core_type = #tpu.core_type<tc>, window_params = [{pipeline_mode = #tpu.pipeline_mode<synchronous>, transform_indices = @transform_0, window_bounds = array<i64: 16, 256>}, {pipeline_mode = #tpu.pipeline_mode<synchronous>, transform_indices = @transform_1, window_bounds = array<i64: 16, 128>}, {pipeline_mode = #tpu.pipeline_mode<synchronous>, transform_indices = @transform_2, window_bounds = array<i64: 16, 16>}, {pipeline_mode = #tpu.pipeline_mode<synchronous>, transform_indices = @transform_3, window_bounds = array<i64: 256, 128>}, {transform_indices = @transform_4, window_bounds = array<i64: 1, 128, 384>}, {transform_indices = @transform_5, window_bounds = array<i64: 1, 128, 128>}, {transform_indices = @transform_6, window_bounds = array<i64: 1, 128, 128>}, {transform_indices = @transform_7, window_bounds = array<i64: 1, 128, 128>}, {transform_indices = @transform_8, window_bounds = array<i64: 1, 10, 128>}, {pipeline_mode = #tpu.pipeline_mode<synchronous>, transform_indices = @transform_9, window_bounds = array<i64: 2, 128>}, {pipeline_mode = #tpu.pipeline_mode<synchronous>, transform_indices = @transform_10, window_bounds = array<i64: 16, 128>}]} {
    %0 = tpu.iota {dimensions = array<i32: 1>} : vector<1x128xi32>
    %c32_i32 = arith.constant 32 : i32
    %1 = vector.broadcast %c32_i32 : i32 to vector<1x128xi32>
    %2 = arith.cmpi slt, %0, %1 : vector<1x128xi32>
    %3 = arith.extui %2 : vector<1x128xi1> to vector<1x128xi32>
    %4 = arith.sitofp %3 : vector<1x128xi32> to vector<1x128xf32>
    %c0_i32 = arith.constant 0 : i32
    %5 = vector.broadcast %c0_i32 : i32 to vector<1x128xi32>
    %6 = arith.cmpi sge, %0, %5 : vector<1x128xi32>
    %c64_i32 = arith.constant 64 : i32
    %7 = vector.broadcast %c64_i32 : i32 to vector<1x128xi32>
    %8 = arith.cmpi slt, %0, %7 : vector<1x128xi32>
    %9 = arith.andi %6, %8 : vector<1x128xi1>
    %10 = arith.extui %9 : vector<1x128xi1> to vector<1x128xi32>
    %11 = arith.sitofp %10 : vector<1x128xi32> to vector<1x128xf32>
    %c64_i32_0 = arith.constant 64 : i32
    %12 = vector.broadcast %c64_i32_0 : i32 to vector<1x128xi32>
    %13 = arith.cmpi sge, %0, %12 : vector<1x128xi32>
    %c128_i32 = arith.constant 128 : i32
    %14 = vector.broadcast %c128_i32 : i32 to vector<1x128xi32>
    %15 = arith.cmpi slt, %0, %14 : vector<1x128xi32>
    %16 = arith.andi %13, %15 : vector<1x128xi1>
    %17 = arith.extui %16 : vector<1x128xi1> to vector<1x128xi32>
    %18 = arith.sitofp %17 : vector<1x128xi32> to vector<1x128xf32>
    %c0_i32_1 = arith.constant 0 : i32
    %19 = arith.cmpi eq, %arg0, %c0_i32_1 : i32
    %20 = arith.extui %19 : i1 to i32
    %c0_i32_2 = arith.constant 0 : i32
    %21 = arith.cmpi ne, %20, %c0_i32_2 : i32
    scf.if %21 {
      %c0_51 = arith.constant 0 : index
      %c0_52 = arith.constant 0 : index
      %174 = vector.load %arg1[%c0_51, %c0_52] : memref<16x256xbf16, #tpu.memory_space<vmem>>, vector<16x256xbf16>
      %c0_53 = arith.constant 0 : index
      %c0_54 = arith.constant 0 : index
      %175 = vector.load %arg4[%c0_53, %c0_54] : memref<256x128xbf16, #tpu.memory_space<vmem>>, vector<256x128xbf16>
      %cst_55 = arith.constant dense<0.000000e+00> : vector<16x128xf32>
      %176 = tpu.matmul %174, %175, %cst_55 {dimension_numbers = #tpu.dot_dimension_numbers<[1], [0], [0], [1], [0, 0, 1, 1], [], []>} : vector<16x256xbf16>, vector<256x128xbf16>, vector<16x128xf32> -> vector<16x128xf32>
      %c0_56 = arith.constant 0 : index
      %c0_57 = arith.constant 0 : index
      %177 = vector.load %arg2[%c0_56, %c0_57] : memref<16x128xf32, #tpu.memory_space<vmem>>, vector<16x128xf32>
      %178 = arith.addf %176, %177 : vector<16x128xf32>
      %c0_58 = arith.constant 0 : index
      %c0_59 = arith.constant 0 : index
      %179 = vector.load %arg12[%c0_58, %c0_59] : memref<16x128xf32, #tpu.memory_space<vmem>>, vector<16x128xf32>
      tpu.vector_store %arg12[%c0_58, %c0_59], %178 {strides = array<i32>} : memref<16x128xf32, #tpu.memory_space<vmem>>, vector<16x128xf32>,
    } else {
    }
    %c0 = arith.constant 0 : index
    %c0_3 = arith.constant 0 : index
    %22 = vector.load %arg12[%c0, %c0_3] : memref<16x128xf32, #tpu.memory_space<vmem>>, vector<16x128xf32>
    %c0_4 = arith.constant 0 : index
    %c0_5 = arith.constant 0 : index
    %c0_6 = arith.constant 0 : index
    %23 = vector.load %arg9[%c0_4, %c0_5, %c0_6] : memref<1x10x128xf32, #tpu.memory_space<vmem>>, vector<1x10x128xf32>
    %24 = vector.shape_cast %23 : vector<1x10x128xf32> to vector<10x128xf32>
    %25 = vector.extract_strided_slice %24 {offsets = [0, 0], sizes = [1, 128], strides = [1, 1]} : vector<10x128xf32> to vector<1x128xf32>
    %26 = vector.extract_strided_slice %24 {offsets = [1, 0], sizes = [1, 128], strides = [1, 1]} : vector<10x128xf32> to vector<1x128xf32>
    %27 = vector.extract_strided_slice %24 {offsets = [2, 0], sizes = [1, 128], strides = [1, 1]} : vector<10x128xf32> to vector<1x128xf32>
    %28 = vector.extract_strided_slice %24 {offsets = [3, 0], sizes = [1, 128], strides = [1, 1]} : vector<10x128xf32> to vector<1x128xf32>
    %29 = vector.extract_strided_slice %24 {offsets = [4, 0], sizes = [1, 128], strides = [1, 1]} : vector<10x128xf32> to vector<1x128xf32>
    %30 = vector.extract_strided_slice %24 {offsets = [5, 0], sizes = [1, 128], strides = [1, 1]} : vector<10x128xf32> to vector<1x128xf32>
    %31 = vector.extract_strided_slice %24 {offsets = [6, 0], sizes = [1, 128], strides = [1, 1]} : vector<10x128xf32> to vector<1x128xf32>
    %32 = vector.extract_strided_slice %24 {offsets = [7, 0], sizes = [1, 128], strides = [1, 1]} : vector<10x128xf32> to vector<1x128xf32>
    %33 = vector.extract_strided_slice %24 {offsets = [8, 0], sizes = [1, 128], strides = [1, 1]} : vector<10x128xf32> to vector<1x128xf32>
    %34 = vector.extract_strided_slice %24 {offsets = [9, 0], sizes = [1, 128], strides = [1, 1]} : vector<10x128xf32> to vector<1x128xf32>
    %cst = arith.constant dense<0.000000e+00> : vector<16xf32>
    %35 = vector.multi_reduction <add>, %22, %cst [1] : vector<16x128xf32> to vector<16xf32>
    %36 = vector.shape_cast %35 : vector<16xf32> to vector<16x1xf32>
    %cst_7 = arith.constant 3.125000e-02 : f32
    %37 = vector.broadcast %cst_7 : f32 to vector<16x1xf32>
    %38 = arith.mulf %36, %37 : vector<16x1xf32>
    %39 = vector.broadcast %38 : vector<16x1xf32> to vector<16x128xf32>
    %40 = arith.subf %22, %39 : vector<16x128xf32>
    %41 = vector.broadcast %4 : vector<1x128xf32> to vector<16x128xf32>
    %42 = arith.mulf %40, %41 : vector<16x128xf32>
    %43 = arith.mulf %42, %42 : vector<16x128xf32>
    %cst_8 = arith.constant dense<0.000000e+00> : vector<16xf32>
    %44 = vector.multi_reduction <add>, %43, %cst_8 [1] : vector<16x128xf32> to vector<16xf32>
    %45 = vector.shape_cast %44 : vector<16xf32> to vector<16x1xf32>
    %cst_9 = arith.constant 3.125000e-02 : f32
    %46 = vector.broadcast %cst_9 : f32 to vector<16x1xf32>
    %47 = arith.mulf %45, %46 : vector<16x1xf32>
    %cst_10 = arith.constant 9.99999996E-13 : f32
    %48 = vector.broadcast %cst_10 : f32 to vector<16x1xf32>
    %49 = arith.addf %47, %48 : vector<16x1xf32>
    %50 = math.rsqrt %49 : vector<16x1xf32>
    %51 = vector.broadcast %50 : vector<16x1xf32> to vector<16x128xf32>
    %52 = arith.mulf %42, %51 : vector<16x128xf32>
    %53 = vector.broadcast %25 : vector<1x128xf32> to vector<16x128xf32>
    %54 = arith.mulf %52, %53 : vector<16x128xf32>
    %55 = vector.broadcast %26 : vector<1x128xf32> to vector<16x128xf32>
    %56 = arith.addf %54, %55 : vector<16x128xf32>
    %57 = arith.truncf %56 : vector<16x128xf32> to vector<16x128xbf16>
    %c0_11 = arith.constant 0 : index
    %c0_12 = arith.constant 0 : index
    %c0_13 = arith.constant 0 : index
    %58 = vector.load %arg5[%c0_11, %c0_12, %c0_13] : memref<1x128x384xbf16, #tpu.memory_space<vmem>>, vector<1x128x384xbf16>
    %59 = vector.shape_cast %58 : vector<1x128x384xbf16> to vector<128x384xbf16>
    %cst_14 = arith.constant dense<0.000000e+00> : vector<16x384xf32>
    %60 = tpu.matmul %57, %59, %cst_14 {dimension_numbers = #tpu.dot_dimension_numbers<[1], [0], [0], [1], [0, 0, 1, 1], [], []>} : vector<16x128xbf16>, vector<128x384xbf16>, vector<16x384xf32> -> vector<16x384xf32>
    %61 = vector.extract_strided_slice %60 {offsets = [0, 0], sizes = [16, 128], strides = [1, 1]} : vector<16x384xf32> to vector<16x128xf32>
    %62 = vector.broadcast %27 : vector<1x128xf32> to vector<16x128xf32>
    %63 = arith.addf %61, %62 : vector<16x128xf32>
    %64 = vector.extract_strided_slice %60 {offsets = [0, 128], sizes = [16, 128], strides = [1, 1]} : vector<16x384xf32> to vector<16x128xf32>
    %65 = vector.broadcast %28 : vector<1x128xf32> to vector<16x128xf32>
    %66 = arith.addf %64, %65 : vector<16x128xf32>
    %67 = vector.extract_strided_slice %60 {offsets = [0, 256], sizes = [16, 128], strides = [1, 1]} : vector<16x384xf32> to vector<16x128xf32>
    %68 = vector.broadcast %29 : vector<1x128xf32> to vector<16x128xf32>
    %69 = arith.addf %67, %68 : vector<16x128xf32>
    %70 = arith.truncf %63 : vector<16x128xf32> to vector<16x128xbf16>
    %c0_15 = arith.constant 0 : index
    %c0_16 = arith.constant 0 : index
    %71 = vector.load %arg3[%c0_15, %c0_16] : memref<16x16xf32, #tpu.memory_space<vmem>>, vector<16x16xf32>
    %72 = vector.broadcast %11 : vector<1x128xf32> to vector<16x128xf32>
    %73 = arith.mulf %66, %72 : vector<16x128xf32>
    %74 = arith.truncf %73 : vector<16x128xf32> to vector<16x128xbf16>
    %cst_17 = arith.constant dense<0.000000e+00> : vector<16x16xf32>
    %75 = tpu.matmul %70, %74, %cst_17 {dimension_numbers = #tpu.dot_dimension_numbers<[1], [1], [0], [0], [0, 0, 1, 0], [], []>} : vector<16x128xbf16>, vector<16x128xbf16>, vector<16x16xf32> -> vector<16x16xf32>
    %cst_18 = arith.constant 2.500000e-01 : f32
    %76 = vector.broadcast %cst_18 : f32 to vector<16x16xf32>
    %77 = arith.mulf %75, %76 : vector<16x16xf32>
    %78 = arith.addf %77, %71 : vector<16x16xf32>
    %cst_19 = arith.constant dense<0xFF800000> : vector<16xf32>
    %79 = vector.multi_reduction <maximumf>, %78, %cst_19 [1] : vector<16x16xf32> to vector<16xf32>
    %80 = vector.shape_cast %79 : vector<16xf32> to vector<16x1xf32>
    %81 = vector.broadcast %80 : vector<16x1xf32> to vector<16x16xf32>
    %82 = arith.subf %78, %81 : vector<16x16xf32>
    %83 = math.exp %82 : vector<16x16xf32>
    %cst_20 = arith.constant dense<0.000000e+00> : vector<16xf32>
    %84 = vector.multi_reduction <add>, %83, %cst_20 [1] : vector<16x16xf32> to vector<16xf32>
    %85 = vector.shape_cast %84 : vector<16xf32> to vector<16x1xf32>
    %86 = vector.broadcast %85 : vector<16x1xf32> to vector<16x16xf32>
    %87 = arith.divf %83, %86 : vector<16x16xf32>
    %88 = vector.broadcast %11 : vector<1x128xf32> to vector<16x128xf32>
    %89 = arith.mulf %69, %88 : vector<16x128xf32>
    %90 = arith.truncf %89 : vector<16x128xf32> to vector<16x128xbf16>
    %91 = arith.truncf %87 : vector<16x16xf32> to vector<16x16xbf16>
    %cst_21 = arith.constant dense<0.000000e+00> : vector<16x128xf32>
    %92 = tpu.matmul %91, %90, %cst_21 {dimension_numbers = #tpu.dot_dimension_numbers<[1], [0], [0], [1], [0, 0, 1, 1], [], []>} : vector<16x16xbf16>, vector<16x128xbf16>, vector<16x128xf32> -> vector<16x128xf32>
    %93 = vector.broadcast %18 : vector<1x128xf32> to vector<16x128xf32>
    %94 = arith.mulf %66, %93 : vector<16x128xf32>
    %95 = arith.truncf %94 : vector<16x128xf32> to vector<16x128xbf16>
    %cst_22 = arith.constant dense<0.000000e+00> : vector<16x16xf32>
    %96 = tpu.matmul %70, %95, %cst_22 {dimension_numbers = #tpu.dot_dimension_numbers<[1], [1], [0], [0], [0, 0, 1, 0], [], []>} : vector<16x128xbf16>, vector<16x128xbf16>, vector<16x16xf32> -> vector<16x16xf32>
    %cst_23 = arith.constant 2.500000e-01 : f32
    %97 = vector.broadcast %cst_23 : f32 to vector<16x16xf32>
    %98 = arith.mulf %96, %97 : vector<16x16xf32>
    %99 = arith.addf %98, %71 : vector<16x16xf32>
    %cst_24 = arith.constant dense<0xFF800000> : vector<16xf32>
    %100 = vector.multi_reduction <maximumf>, %99, %cst_24 [1] : vector<16x16xf32> to vector<16xf32>
    %101 = vector.shape_cast %100 : vector<16xf32> to vector<16x1xf32>
    %102 = vector.broadcast %101 : vector<16x1xf32> to vector<16x16xf32>
    %103 = arith.subf %99, %102 : vector<16x16xf32>
    %104 = math.exp %103 : vector<16x16xf32>
    %cst_25 = arith.constant dense<0.000000e+00> : vector<16xf32>
    %105 = vector.multi_reduction <add>, %104, %cst_25 [1] : vector<16x16xf32> to vector<16xf32>
    %106 = vector.shape_cast %105 : vector<16xf32> to vector<16x1xf32>
    %107 = vector.broadcast %106 : vector<16x1xf32> to vector<16x16xf32>
    %108 = arith.divf %104, %107 : vector<16x16xf32>
    %109 = vector.broadcast %18 : vector<1x128xf32> to vector<16x128xf32>
    %110 = arith.mulf %69, %109 : vector<16x128xf32>
    %111 = arith.truncf %110 : vector<16x128xf32> to vector<16x128xbf16>
    %112 = arith.truncf %108 : vector<16x16xf32> to vector<16x16xbf16>
    %cst_26 = arith.constant dense<0.000000e+00> : vector<16x128xf32>
    %113 = tpu.matmul %112, %111, %cst_26 {dimension_numbers = #tpu.dot_dimension_numbers<[1], [0], [0], [1], [0, 0, 1, 1], [], []>} : vector<16x16xbf16>, vector<16x128xbf16>, vector<16x128xf32> -> vector<16x128xf32>
    %114 = arith.addf %92, %113 : vector<16x128xf32>
    %115 = arith.truncf %114 : vector<16x128xf32> to vector<16x128xbf16>
    %c0_27 = arith.constant 0 : index
    %c0_28 = arith.constant 0 : index
    %c0_29 = arith.constant 0 : index
    %116 = vector.load %arg6[%c0_27, %c0_28, %c0_29] : memref<1x128x128xbf16, #tpu.memory_space<vmem>>, vector<1x128x128xbf16>
    %117 = vector.shape_cast %116 : vector<1x128x128xbf16> to vector<128x128xbf16>
    %cst_30 = arith.constant dense<0.000000e+00> : vector<16x128xf32>
    %118 = tpu.matmul %115, %117, %cst_30 {dimension_numbers = #tpu.dot_dimension_numbers<[1], [0], [0], [1], [0, 0, 1, 1], [], []>} : vector<16x128xbf16>, vector<128x128xbf16>, vector<16x128xf32> -> vector<16x128xf32>
    %119 = vector.broadcast %30 : vector<1x128xf32> to vector<16x128xf32>
    %120 = arith.addf %118, %119 : vector<16x128xf32>
    %121 = arith.addf %22, %120 : vector<16x128xf32>
    %cst_31 = arith.constant dense<0.000000e+00> : vector<16xf32>
    %122 = vector.multi_reduction <add>, %121, %cst_31 [1] : vector<16x128xf32> to vector<16xf32>
    %123 = vector.shape_cast %122 : vector<16xf32> to vector<16x1xf32>
    %cst_32 = arith.constant 3.125000e-02 : f32
    %124 = vector.broadcast %cst_32 : f32 to vector<16x1xf32>
    %125 = arith.mulf %123, %124 : vector<16x1xf32>
    %126 = vector.broadcast %125 : vector<16x1xf32> to vector<16x128xf32>
    %127 = arith.subf %121, %126 : vector<16x128xf32>
    %128 = vector.broadcast %4 : vector<1x128xf32> to vector<16x128xf32>
    %129 = arith.mulf %127, %128 : vector<16x128xf32>
    %130 = arith.mulf %129, %129 : vector<16x128xf32>
    %cst_33 = arith.constant dense<0.000000e+00> : vector<16xf32>
    %131 = vector.multi_reduction <add>, %130, %cst_33 [1] : vector<16x128xf32> to vector<16xf32>
    %132 = vector.shape_cast %131 : vector<16xf32> to vector<16x1xf32>
    %cst_34 = arith.constant 3.125000e-02 : f32
    %133 = vector.broadcast %cst_34 : f32 to vector<16x1xf32>
    %134 = arith.mulf %132, %133 : vector<16x1xf32>
    %cst_35 = arith.constant 9.99999996E-13 : f32
    %135 = vector.broadcast %cst_35 : f32 to vector<16x1xf32>
    %136 = arith.addf %134, %135 : vector<16x1xf32>
    %137 = math.rsqrt %136 : vector<16x1xf32>
    %138 = vector.broadcast %137 : vector<16x1xf32> to vector<16x128xf32>
    %139 = arith.mulf %129, %138 : vector<16x128xf32>
    %140 = vector.broadcast %31 : vector<1x128xf32> to vector<16x128xf32>
    %141 = arith.mulf %139, %140 : vector<16x128xf32>
    %142 = vector.broadcast %32 : vector<1x128xf32> to vector<16x128xf32>
    %143 = arith.addf %141, %142 : vector<16x128xf32>
    %144 = arith.truncf %143 : vector<16x128xf32> to vector<16x128xbf16>
    %c0_36 = arith.constant 0 : index
    %c0_37 = arith.constant 0 : index
    %c0_38 = arith.constant 0 : index
    %145 = vector.load %arg7[%c0_36, %c0_37, %c0_38] : memref<1x128x128xbf16, #tpu.memory_space<vmem>>, vector<1x128x128xbf16>
    %146 = vector.shape_cast %145 : vector<1x128x128xbf16> to vector<128x128xbf16>
    %cst_39 = arith.constant dense<0.000000e+00> : vector<16x128xf32>
    %147 = tpu.matmul %144, %146, %cst_39 {dimension_numbers = #tpu.dot_dimension_numbers<[1], [0], [0], [1], [0, 0, 1, 1], [], []>} : vector<16x128xbf16>, vector<128x128xbf16>, vector<16x128xf32> -> vector<16x128xf32>
    %148 = vector.broadcast %33 : vector<1x128xf32> to vector<16x128xf32>
    %149 = arith.addf %147, %148 : vector<16x128xf32>
    %cst_40 = arith.constant 5.000000e-01 : f32
    %150 = vector.broadcast %cst_40 : f32 to vector<16x128xf32>
    %151 = arith.mulf %150, %149 : vector<16x128xf32>
    %cst_41 = arith.constant 4.471500e-02 : f32
    %152 = vector.broadcast %cst_41 : f32 to vector<16x128xf32>
    %153 = arith.mulf %152, %149 : vector<16x128xf32>
    %154 = arith.mulf %153, %149 : vector<16x128xf32>
    %155 = arith.mulf %154, %149 : vector<16x128xf32>
    %156 = arith.addf %149, %155 : vector<16x128xf32>
    %cst_42 = arith.constant 0.797884583 : f32
    %157 = vector.broadcast %cst_42 : f32 to vector<16x128xf32>
    %158 = arith.mulf %157, %156 : vector<16x128xf32>
    %159 = math.tanh %158 : vector<16x128xf32>
    %cst_43 = arith.constant 1.000000e+00 : f32
    %160 = vector.broadcast %cst_43 : f32 to vector<16x128xf32>
    %161 = arith.addf %160, %159 : vector<16x128xf32>
    %162 = arith.mulf %151, %161 : vector<16x128xf32>
    %163 = arith.truncf %162 : vector<16x128xf32> to vector<16x128xbf16>
    %c0_44 = arith.constant 0 : index
    %c0_45 = arith.constant 0 : index
    %c0_46 = arith.constant 0 : index
    %164 = vector.load %arg8[%c0_44, %c0_45, %c0_46] : memref<1x128x128xbf16, #tpu.memory_space<vmem>>, vector<1x128x128xbf16>
    %165 = vector.shape_cast %164 : vector<1x128x128xbf16> to vector<128x128xbf16>
    %cst_47 = arith.constant dense<0.000000e+00> : vector<16x128xf32>
    %166 = tpu.matmul %163, %165, %cst_47 {dimension_numbers = #tpu.dot_dimension_numbers<[1], [0], [0], [1], [0, 0, 1, 1], [], []>} : vector<16x128xbf16>, vector<128x128xbf16>, vector<16x128xf32> -> vector<16x128xf32>
    %167 = vector.broadcast %34 : vector<1x128xf32> to vector<16x128xf32>
    %168 = arith.addf %166, %167 : vector<16x128xf32>
    %169 = arith.addf %121, %168 : vector<16x128xf32>
    %c0_48 = arith.constant 0 : index
    %c0_49 = arith.constant 0 : index
    %170 = vector.load %arg12[%c0_48, %c0_49] : memref<16x128xf32, #tpu.memory_space<vmem>>, vector<16x128xf32>
    tpu.vector_store %arg12[%c0_48, %c0_49], %169 {strides = array<i32>} : memref<16x128xf32, #tpu.memory_space<vmem>>, vector<16x128xf32>,
    %c1_i32 = arith.constant 1 : i32
    %171 = arith.cmpi eq, %arg0, %c1_i32 : i32
    %172 = arith.extui %171 : i1 to i32
    %c0_i32_50 = arith.constant 0 : i32
    %173 = arith.cmpi ne, %172, %c0_i32_50 : i32
    scf.if %173 {
      %c0_51 = arith.constant 0 : index
      %c0_52 = arith.constant 0 : index
      %174 = vector.load %arg10[%c0_51, %c0_52] : memref<2x128xf32, #tpu.memory_space<vmem>>, vector<2x128xf32>
      %175 = vector.extract_strided_slice %174 {offsets = [0, 0], sizes = [1, 128], strides = [1, 1]} : vector<2x128xf32> to vector<1x128xf32>
      %176 = vector.extract_strided_slice %174 {offsets = [1, 0], sizes = [1, 128], strides = [1, 1]} : vector<2x128xf32> to vector<1x128xf32>
      %cst_53 = arith.constant dense<0.000000e+00> : vector<16xf32>
      %177 = vector.multi_reduction <add>, %169, %cst_53 [1] : vector<16x128xf32> to vector<16xf32>
      %178 = vector.shape_cast %177 : vector<16xf32> to vector<16x1xf32>
      %cst_54 = arith.constant 3.125000e-02 : f32
      %179 = vector.broadcast %cst_54 : f32 to vector<16x1xf32>
      %180 = arith.mulf %178, %179 : vector<16x1xf32>
      %181 = vector.broadcast %180 : vector<16x1xf32> to vector<16x128xf32>
      %182 = arith.subf %169, %181 : vector<16x128xf32>
      %183 = vector.broadcast %4 : vector<1x128xf32> to vector<16x128xf32>
      %184 = arith.mulf %182, %183 : vector<16x128xf32>
      %185 = arith.mulf %184, %184 : vector<16x128xf32>
      %cst_55 = arith.constant dense<0.000000e+00> : vector<16xf32>
      %186 = vector.multi_reduction <add>, %185, %cst_55 [1] : vector<16x128xf32> to vector<16xf32>
      %187 = vector.shape_cast %186 : vector<16xf32> to vector<16x1xf32>
      %cst_56 = arith.constant 3.125000e-02 : f32
      %188 = vector.broadcast %cst_56 : f32 to vector<16x1xf32>
      %189 = arith.mulf %187, %188 : vector<16x1xf32>
      %cst_57 = arith.constant 9.99999996E-13 : f32
      %190 = vector.broadcast %cst_57 : f32 to vector<16x1xf32>
      %191 = arith.addf %189, %190 : vector<16x1xf32>
      %192 = math.rsqrt %191 : vector<16x1xf32>
      %193 = vector.broadcast %192 : vector<16x1xf32> to vector<16x128xf32>
      %194 = arith.mulf %184, %193 : vector<16x128xf32>
      %195 = vector.broadcast %175 : vector<1x128xf32> to vector<16x128xf32>
      %196 = arith.mulf %194, %195 : vector<16x128xf32>
      %197 = vector.broadcast %176 : vector<1x128xf32> to vector<16x128xf32>
      %198 = arith.addf %196, %197 : vector<16x128xf32>
      %c0_58 = arith.constant 0 : index
      %c0_59 = arith.constant 0 : index
      %199 = vector.load %arg11[%c0_58, %c0_59] : memref<16x128xf32, #tpu.memory_space<vmem>>, vector<16x128xf32>
      tpu.vector_store %arg11[%c0_58, %c0_59], %198 {strides = array<i32>} : memref<16x128xf32, #tpu.memory_space<vmem>>, vector<16x128xf32>,
    } else {
    }
    return
  }
  func.func @transform_0(%arg0: i32) -> (i32, i32) {
    %c0_i32 = arith.constant 0 : i32
    %c0_i32_0 = arith.constant 0 : i32
    %c0_i32_1 = arith.constant 0 : i32
    return %c0_i32, %c0_i32_0 : i32, i32
  }
  func.func @transform_1(%arg0: i32) -> (i32, i32) {
    %c0_i32 = arith.constant 0 : i32
    %c0_i32_0 = arith.constant 0 : i32
    %c0_i32_1 = arith.constant 0 : i32
    return %c0_i32, %c0_i32_0 : i32, i32
  }
  func.func @transform_2(%arg0: i32) -> (i32, i32) {
    %c0_i32 = arith.constant 0 : i32
    %c0_i32_0 = arith.constant 0 : i32
    %c0_i32_1 = arith.constant 0 : i32
    return %c0_i32, %c0_i32_0 : i32, i32
  }
  func.func @transform_3(%arg0: i32) -> (i32, i32) {
    %c0_i32 = arith.constant 0 : i32
    %c0_i32_0 = arith.constant 0 : i32
    %c0_i32_1 = arith.constant 0 : i32
    return %c0_i32, %c0_i32_0 : i32, i32
  }
  func.func @transform_4(%arg0: i32) -> (i32, i32, i32) {
    %c0_i32 = arith.constant 0 : i32
    %c0_i32_0 = arith.constant 0 : i32
    %c0_i32_1 = arith.constant 0 : i32
    return %arg0, %c0_i32, %c0_i32_0 : i32, i32, i32
  }
  func.func @transform_5(%arg0: i32) -> (i32, i32, i32) {
    %c0_i32 = arith.constant 0 : i32
    %c0_i32_0 = arith.constant 0 : i32
    %c0_i32_1 = arith.constant 0 : i32
    return %arg0, %c0_i32, %c0_i32_0 : i32, i32, i32
  }
  func.func @transform_6(%arg0: i32) -> (i32, i32, i32) {
    %c0_i32 = arith.constant 0 : i32
    %c0_i32_0 = arith.constant 0 : i32
    %c0_i32_1 = arith.constant 0 : i32
    return %arg0, %c0_i32, %c0_i32_0 : i32, i32, i32
  }
  func.func @transform_7(%arg0: i32) -> (i32, i32, i32) {
    %c0_i32 = arith.constant 0 : i32
    %c0_i32_0 = arith.constant 0 : i32
    %c0_i32_1 = arith.constant 0 : i32
    return %arg0, %c0_i32, %c0_i32_0 : i32, i32, i32
  }
  func.func @transform_8(%arg0: i32) -> (i32, i32, i32) {
    %c0_i32 = arith.constant 0 : i32
    %c0_i32_0 = arith.constant 0 : i32
    %c0_i32_1 = arith.constant 0 : i32
    return %arg0, %c0_i32, %c0_i32_0 : i32, i32, i32
  }
  func.func @transform_9(%arg0: i32) -> (i32, i32) {
    %c0_i32 = arith.constant 0 : i32
    %c0_i32_0 = arith.constant 0 : i32
    %c0_i32_1 = arith.constant 0 : i32
    return %c0_i32, %c0_i32_0 : i32, i32
  }
  func.func @transform_10(%arg0: i32) -> (i32, i32) {
    %c0_i32 = arith.constant 0 : i32
    %c0_i32_0 = arith.constant 0 : i32
    %c0_i32_1 = arith.constant 0 : i32
    return %c0_i32, %c0_i32_0 : i32, i32
  }
}

</mosaic_0001>

<llo_original>
// kernel: dino_forward.1
$region0: #{dino_forward.1}
  #allocation0 [shape = 'u32[]', space=smem, size = 0x4, offset = 0x4, fixed_abs, tag = 'smem constant byte address 0x4 - core index']
  #allocation1 [shape = 'u32[144,128]{1,0:T(1,128)}', space=vmem, size = 0x12000, scoped, tag = 'internal scratch']
  #allocation2 [shape = 'f32[16,128]{1,0:T(8,128)}', space=vmem, size = 0x2000, scoped, tag = 'scratch operand']
  %s0 = inlined_call_operand.vmem [shape: bf16[16,256], index: 0, kind: input, shape index: {}]
  %s1 = inlined_call_operand.vmem [shape: f32[16,128], index: 1, kind: input, shape index: {}]
  %s2 = inlined_call_operand.vmem [shape: f32[16,16], index: 2, kind: input, shape index: {}]
  %s3 = inlined_call_operand.vmem [shape: bf16[256,128], index: 3, kind: input, shape index: {}]
  %s4 = inlined_call_operand.vmem [shape: bf16[2,128,384], index: 4, kind: input, shape index: {}]
  %s5 = inlined_call_operand.vmem [shape: bf16[2,128,128], index: 5, kind: input, shape index: {}]
  %s6 = inlined_call_operand.hbm [shape: bf16[2,128,128], index: 6, kind: input, shape index: {}]
  %s7 = inlined_call_operand.hbm [shape: bf16[2,128,128], index: 7, kind: input, shape index: {}]
  %s8 = inlined_call_operand.vmem [shape: f32[2,10,128], index: 8, kind: input, shape index: {}]
  %s9 = inlined_call_operand.vmem [shape: f32[2,128], index: 9, kind: input, shape index: {}]
  %s10 = inlined_call_operand.vmem [shape: f32[16,128], index: 10, kind: output, shape index: {}]
  %s11 = sld [smem:[#allocation0]]
  $region89: #{dino_forward.1} parent=0
    _
  %s13 = ssub.s32 1, %s11
  %s14 = scalar_select 0, %s13, %s11
  $region1: #{dino_forward.1} parent=0
    #allocation3 [shape = 'u8[65536]{0}', space=vmem, size = 0x10000, scoped, tag = 'input window, operand 6']
    #allocation4 [shape = 's32[2]{0}', space=sflag, size = 0x8, scoped, tag = 'scoped memory for dino_forward.1']
    #allocation5 [shape = 'u8[65536]{0}', space=vmem, size = 0x10000, scoped, tag = 'input window, operand 7']
    #allocation6 [shape = 's32[2]{0}', space=sflag, size = 0x8, scoped, tag = 'scoped memory for dino_forward.1']
    %15 = vsyncpa [#allocation4], 0
    %s16 = scalar_lea.sflag [#allocation4], 1
    %17 = vsyncpa %s16, 0
    %18 = vsyncpa [#allocation6], 0
    %s19 = scalar_lea.sflag [#allocation6], 1
    %20 = vsyncpa %s19, 0
    loop: start=0, step=1, limit=4
    $region2: #{dino_forward.1} parent=1 // loop_pre_header
      _
    $region3: #{dino_forward.1} parent=1 // loop_header
      %s22 = sphi 0, %s26
      %p23 = scmp.ge.s32.totalorder %s22, 4
      %s30 = sphi 0, %s30
      %s32 = sphi 0, %s30
      %s33 = sphi 0, %s32
      %s47 = sphi 0, %s33
      %s51 = sphi 0, %s51
      %s53 = sphi 0, %s51
      %s54 = sphi 0, %s53
      %s68 = sphi 0, %s54
      %s72 = sphi 0, %s72
      %s74 = sphi 0, %s72
      %s75 = sphi 0, %s74
      %s89 = sphi 0, %s75
      %s93 = sphi 0, %s93
      %s95 = sphi 0, %s93
      %s96 = sphi 0, %s95
      %s110 = sphi 0, %s96
      %s116 = sphi 0, %s118
      %s119 = sphi 0, %s116
      %s120 = sphi 0, %s119
      %s136 = sphi 0, %s120
      %s142 = sphi 0, %s144
      %s145 = sphi 0, %s142
      %s146 = sphi 0, %s145
      %s162 = sphi 0, %s146
      %s168 = sphi 0, %s170
      %s171 = sphi 0, %s168
      %s172 = sphi 0, %s171
      %s188 = sphi 0, %s172
      %s194 = sphi 0, %s196
      %s197 = sphi 0, %s194
      %s198 = sphi 0, %s197
      %s214 = sphi 0, %s198
      %s220 = sphi 0, %s222
      %s223 = sphi 0, %s220
      %s224 = sphi 0, %s223
      %s240 = sphi 0, %s224
      %s244 = sphi 0, %s244
      %s246 = sphi 0, %s244
      %s247 = sphi 0, %s246
      %s261 = sphi 0, %s247
      %s265 = sphi 0, %s265
      %s267 = sphi 0, %s265
      %s268 = sphi 0, %s267
      %s282 = sphi 0, %s268
    $region4: #{dino_forward.1} parent=1 // loop_header_branch
      %25 = sbr.rel (%p23) target = $region8
    $region5: #{dino_forward.1} parent=1 // loop_body
      %s27 = ssub.s32 %s22, 1
      %s28 = ssub.s32 %s22, 2
      %s29 = sadd.s32 %s22, 1
      %s31 = sadd.s32 %s30, 1
      %p34 = scmp.eq.s32.totalorder %s22, 1
      %p35 = scmp.ne.s32.totalorder %s30, %s32
      %p36 = scmp.eq.s32.totalorder %s22, 0
      %p37 = por %p35, %p36
      %p38 = scmp.ne.s32.totalorder %s30, %s32
      %p39 = scmp.eq.s32.totalorder %s27, 1
      %p40 = por %p38, %p39
      %p41 = scmp.ne.s32.totalorder %s32, %s33
      %p42 = scmp.eq.s32.totalorder %s27, 0
      %p43 = por %p41, %p42
      %p44 = scmp.ne.s32.totalorder %s32, %s33
      %p45 = scmp.eq.s32.totalorder %s28, 1
      %p46 = por %p44, %p45
      %p48 = scmp.ne.s32.totalorder %s33, %s47
      %p49 = scmp.eq.s32.totalorder %s28, 0
      %p50 = por %p48, %p49
      %s52 = sadd.s32 %s51, 1
      %p55 = scmp.eq.s32.totalorder %s22, 1
      %p56 = scmp.ne.s32.totalorder %s51, %s53
      %p57 = scmp.eq.s32.totalorder %s22, 0
      %p58 = por %p56, %p57
      %p59 = scmp.ne.s32.totalorder %s51, %s53
      %p60 = scmp.eq.s32.totalorder %s27, 1
      %p61 = por %p59, %p60
      %p62 = scmp.ne.s32.totalorder %s53, %s54
      %p63 = scmp.eq.s32.totalorder %s27, 0
      %p64 = por %p62, %p63
      %p65 = scmp.ne.s32.totalorder %s53, %s54
      %p66 = scmp.eq.s32.totalorder %s28, 1
      %p67 = por %p65, %p66
      %p69 = scmp.ne.s32.totalorder %s54, %s68
      %p70 = scmp.eq.s32.totalorder %s28, 0
      %p71 = por %p69, %p70
      %s73 = sadd.s32 %s72, 1
      %p76 = scmp.eq.s32.totalorder %s22, 1
      %p77 = scmp.ne.s32.totalorder %s72, %s74
      %p78 = scmp.eq.s32.totalorder %s22, 0
      %p79 = por %p77, %p78
      %p80 = scmp.ne.s32.totalorder %s72, %s74
      %p81 = scmp.eq.s32.totalorder %s27, 1
      %p82 = por %p80, %p81
      %p83 = scmp.ne.s32.totalorder %s74, %s75
      %p84 = scmp.eq.s32.totalorder %s27, 0
      %p85 = por %p83, %p84
      %p86 = scmp.ne.s32.totalorder %s74, %s75
      %p87 = scmp.eq.s32.totalorder %s28, 1
      %p88 = por %p86, %p87
      %p90 = scmp.ne.s32.totalorder %s75, %s89
      %p91 = scmp.eq.s32.totalorder %s28, 0
      %p92 = por %p90, %p91
      %s94 = sadd.s32 %s93, 1
      %p97 = scmp.eq.s32.totalorder %s22, 1
      %p98 = scmp.ne.s32.totalorder %s93, %s95
      %p99 = scmp.eq.s32.totalorder %s22, 0
      %p100 = por %p98, %p99
      %p101 = scmp.ne.s32.totalorder %s93, %s95
      %p102 = scmp.eq.s32.totalorder %s27, 1
      %p103 = por %p101, %p102
      %p104 = scmp.ne.s32.totalorder %s95, %s96
      %p105 = scmp.eq.s32.totalorder %s27, 0
      %p106 = por %p104, %p105
      %p107 = scmp.ne.s32.totalorder %s95, %s96
      %p108 = scmp.eq.s32.totalorder %s28, 1
      %p109 = por %p107, %p108
      %p111 = scmp.ne.s32.totalorder %s96, %s110
      %p112 = scmp.eq.s32.totalorder %s28, 0
      %p113 = por %p111, %p112
      %s114 = ssub.s32 %s22, %s29
      %p115 = scmp.eq.s32.totalorder %s114, 0
      %s117 = sadd.s32 %s116, 1
      %s118 = scalar_select %p115, %s116, %s117
      %p121 = pneg %p115
      %p122 = scmp.eq.s32.totalorder %s22, 1
      %p123 = por %p121, %p122
      %p124 = scmp.ne.s32.totalorder %s116, %s119
      %p125 = scmp.eq.s32.totalorder %s22, 0
      %p126 = por %p124, %p125
      %p127 = scmp.ne.s32.totalorder %s116, %s119
      %p128 = scmp.eq.s32.totalorder %s27, 1
      %p129 = por %p127, %p128
      %p130 = scmp.ne.s32.totalorder %s119, %s120
      %p131 = scmp.eq.s32.totalorder %s27, 0
      %p132 = por %p130, %p131
      %p133 = scmp.ne.s32.totalorder %s119, %s120
      %p134 = scmp.eq.s32.totalorder %s28, 1
      %p135 = por %p133, %p134
      %p137 = scmp.ne.s32.totalorder %s120, %s136
      %p138 = scmp.eq.s32.totalorder %s28, 0
      %p139 = por %p137, %p138
      %s140 = ssub.s32 %s22, %s29
      %p141 = scmp.eq.s32.totalorder %s140, 0
      %s143 = sadd.s32 %s142, 1
      %s144 = scalar_select %p141, %s142, %s143
      %p147 = pneg %p141
      %p148 = scmp.eq.s32.totalorder %s22, 1
      %p149 = por %p147, %p148
      %p150 = scmp.ne.s32.totalorder %s142, %s145
      %p151 = scmp.eq.s32.totalorder %s22, 0
      %p152 = por %p150, %p151
      %p153 = scmp.ne.s32.totalorder %s142, %s145
      %p154 = scmp.eq.s32.totalorder %s27, 1
      %p155 = por %p153, %p154
      %p156 = scmp.ne.s32.totalorder %s145, %s146
      %p157 = scmp.eq.s32.totalorder %s27, 0
      %p158 = por %p156, %p157
      %p159 = scmp.ne.s32.totalorder %s145, %s146
      %p160 = scmp.eq.s32.totalorder %s28, 1
      %p161 = por %p159, %p160
      %p163 = scmp.ne.s32.totalorder %s146, %s162
      %p164 = scmp.eq.s32.totalorder %s28, 0
      %p165 = por %p163, %p164
      %s166 = ssub.s32 %s22, %s29
      %p167 = scmp.eq.s32.totalorder %s166, 0
      %s169 = sadd.s32 %s168, 1
      %s170 = scalar_select %p167, %s168, %s169
      %p173 = pneg %p167
      %p174 = scmp.eq.s32.totalorder %s22, 1
      %p175 = por %p173, %p174
      %p176 = scmp.ne.s32.totalorder %s168, %s171
      %p177 = scmp.eq.s32.totalorder %s22, 0
      %p178 = por %p176, %p177
      %p179 = scmp.ne.s32.totalorder %s168, %s171
      %p180 = scmp.eq.s32.totalorder %s27, 1
      %p181 = por %p179, %p180
      %p182 = scmp.ne.s32.totalorder %s171, %s172
      %p183 = scmp.eq.s32.totalorder %s27, 0
      %p184 = por %p182, %p183
      %p185 = scmp.ne.s32.totalorder %s171, %s172
      %p186 = scmp.eq.s32.totalorder %s28, 1
      %p187 = por %p185, %p186
      %p189 = scmp.ne.s32.totalorder %s172, %s188
      %p190 = scmp.eq.s32.totalorder %s28, 0
      %p191 = por %p189, %p190
      %s192 = ssub.s32 %s22, %s29
      %p193 = scmp.eq.s32.totalorder %s192, 0
      %s195 = sadd.s32 %s194, 1
      %s196 = scalar_select %p193, %s194, %s195
      %p199 = pneg %p193
      %p200 = scmp.eq.s32.totalorder %s22, 1
      %p201 = por %p199, %p200
      %p202 = scmp.ne.s32.totalorder %s194, %s197
      %p203 = scmp.eq.s32.totalorder %s22, 0
      %p204 = por %p202, %p203
      %p205 = scmp.ne.s32.totalorder %s194, %s197
      %p206 = scmp.eq.s32.totalorder %s27, 1
      %p207 = por %p205, %p206
      %p208 = scmp.ne.s32.totalorder %s197, %s198
      %p209 = scmp.eq.s32.totalorder %s27, 0
      %p210 = por %p208, %p209
      %p211 = scmp.ne.s32.totalorder %s197, %s198
      %p212 = scmp.eq.s32.totalorder %s28, 1
      %p213 = por %p211, %p212
      %p215 = scmp.ne.s32.totalorder %s198, %s214
      %p216 = scmp.eq.s32.totalorder %s28, 0
      %p217 = por %p215, %p216
      %s218 = ssub.s32 %s22, %s29
      %p219 = scmp.eq.s32.totalorder %s218, 0
      %s221 = sadd.s32 %s220, 1
      %s222 = scalar_select %p219, %s220, %s221
      %p225 = pneg %p219
      %p226 = scmp.eq.s32.totalorder %s22, 1
      %p227 = por %p225, %p226
      %p228 = scmp.ne.s32.totalorder %s220, %s223
      %p229 = scmp.eq.s32.totalorder %s22, 0
      %p230 = por %p228, %p229
      %p231 = scmp.ne.s32.totalorder %s220, %s223
      %p232 = scmp.eq.s32.totalorder %s27, 1
      %p233 = por %p231, %p232
      %p234 = scmp.ne.s32.totalorder %s223, %s224
      %p235 = scmp.eq.s32.totalorder %s27, 0
      %p236 = por %p234, %p235
      %p237 = scmp.ne.s32.totalorder %s223, %s224
      %p238 = scmp.eq.s32.totalorder %s28, 1
      %p239 = por %p237, %p238
      %p241 = scmp.ne.s32.totalorder %s224, %s240
      %p242 = scmp.eq.s32.totalorder %s28, 0
      %p243 = por %p241, %p242
      %s245 = sadd.s32 %s244, 1
      %p248 = scmp.eq.s32.totalorder %s22, 1
      %p249 = scmp.ne.s32.totalorder %s244, %s246
      %p250 = scmp.eq.s32.totalorder %s22, 0
      %p251 = por %p249, %p250
      %p252 = scmp.ne.s32.totalorder %s244, %s246
      %p253 = scmp.eq.s32.totalorder %s27, 1
      %p254 = por %p252, %p253
      %p255 = scmp.ne.s32.totalorder %s246, %s247
      %p256 = scmp.eq.s32.totalorder %s27, 0
      %p257 = por %p255, %p256
      %p258 = scmp.ne.s32.totalorder %s246, %s247
      %p259 = scmp.eq.s32.totalorder %s28, 1
      %p260 = por %p258, %p259
      %p262 = scmp.ne.s32.totalorder %s247, %s261
      %p263 = scmp.eq.s32.totalorder %s28, 0
      %p264 = por %p262, %p263
      %s266 = sadd.s32 %s265, 1
      %p269 = scmp.eq.s32.totalorder %s22, 1
      %p270 = scmp.ne.s32.totalorder %s265, %s267
      %p271 = scmp.eq.s32.totalorder %s22, 0
      %p272 = por %p270, %p271
      %p273 = scmp.ne.s32.totalorder %s265, %s267
      %p274 = scmp.eq.s32.totalorder %s27, 1
      %p275 = por %p273, %p274
      %p276 = scmp.ne.s32.totalorder %s267, %s268
      %p277 = scmp.eq.s32.totalorder %s27, 0
      %p278 = por %p276, %p277
      %p279 = scmp.ne.s32.totalorder %s267, %s268
      %p280 = scmp.eq.s32.totalorder %s28, 1
      %p281 = por %p279, %p280
      %p283 = scmp.ne.s32.totalorder %s268, %s282
      %p284 = scmp.eq.s32.totalorder %s28, 0
      %p285 = por %p283, %p284
      %p286 = scmp.le.s32.totalorder 1, %s22
      %p287 = scmp.lt.s32.totalorder %s22, 3
      %p288 = pnand %p286, %p287
      %p289 = pneg %p288
      // Predicated region
      $region9: #{dino_forward.1} parent=5 // pred_check
        _
      $region10: #{dino_forward.1} parent=5 // pred_check_branch
        %291 = sbr.rel (%p288) target = $region12
      $region11: #{dino_forward.1} parent=5 // pred_region
        %s292 = ssub.s32 %s22, 1
        // Predicated region
        $region13: #{dino_forward.1} parent=11 // pred_check
          %p293 = pneg %p43
        $region14: #{dino_forward.1} parent=11 // pred_check_branch
          %295 = sbr.rel (%p293) target = $region16
        $region15: #{dino_forward.1} parent=11 // pred_region
          _
        $region16: #{dino_forward.1} parent=11 // pred_fallthru
          _
        // Predicated region
        $region17: #{dino_forward.1} parent=11 // pred_check
          %p296 = pneg %p64
        $region18: #{dino_forward.1} parent=11 // pred_check_branch
          %298 = sbr.rel (%p296) target = $region20
        $region19: #{dino_forward.1} parent=11 // pred_region
          _
        $region20: #{dino_forward.1} parent=11 // pred_fallthru
          _
        // Predicated region
        $region21: #{dino_forward.1} parent=11 // pred_check
          %p299 = pneg %p85
        $region22: #{dino_forward.1} parent=11 // pred_check_branch
          %301 = sbr.rel (%p299) target = $region24
        $region23: #{dino_forward.1} parent=11 // pred_region
          _
        $region24: #{dino_forward.1} parent=11 // pred_fallthru
          _
        // Predicated region
        $region25: #{dino_forward.1} parent=11 // pred_check
          %p302 = pneg %p106
        $region26: #{dino_forward.1} parent=11 // pred_check_branch
          %304 = sbr.rel (%p302) target = $region28
        $region27: #{dino_forward.1} parent=11 // pred_region
          _
        $region28: #{dino_forward.1} parent=11 // pred_fallthru
          _
        // Predicated region
        $region29: #{dino_forward.1} parent=11 // pred_check
          %p305 = pneg %p257
        $region30: #{dino_forward.1} parent=11 // pred_check_branch
          %307 = sbr.rel (%p305) target = $region32
        $region31: #{dino_forward.1} parent=11 // pred_region
          _
        $region32: #{dino_forward.1} parent=11 // pred_fallthru
          _
      $region12: #{dino_forward.1} parent=5 // pred_fallthru
        _
      %p308 = scmp.lt.s32.totalorder %s22, 2
      // Predicated region
      $region33: #{dino_forward.1} parent=5 // pred_check
        %p309 = pneg %p308
      $region34: #{dino_forward.1} parent=5 // pred_check_branch
        %311 = sbr.rel (%p309) target = $region36
      $region35: #{dino_forward.1} parent=5 // pred_region
        // Predicated region
        $region37: #{dino_forward.1} parent=35 // pred_check
          %p312 = pneg %p126
        $region38: #{dino_forward.1} parent=35 // pred_check_branch
          %314 = sbr.rel (%p312) target = $region40
        $region39: #{dino_forward.1} parent=35 // pred_region
          %p315 = scmp.lt.s32.totalorder %s22, 1
          %s316 = scalar_select %p315, %s22, 1
          %s317 = smul.addr %s316, 48
          %s318 = smul.addr %s317, 4
          %s319 = scalar_lea.vmem %s4, %s318
        $region40: #{dino_forward.1} parent=35 // pred_fallthru
          _
        // Predicated region
        $region41: #{dino_forward.1} parent=35 // pred_check
          %p320 = pneg %p152
        $region42: #{dino_forward.1} parent=35 // pred_check_branch
          %322 = sbr.rel (%p320) target = $region44
        $region43: #{dino_forward.1} parent=35 // pred_region
          %p323 = scmp.lt.s32.totalorder %s22, 1
          %s324 = scalar_select %p323, %s22, 1
          %s325 = smul.addr %s324, 16
          %s326 = smul.addr %s325, 4
          %s327 = scalar_lea.vmem %s5, %s326
        $region44: #{dino_forward.1} parent=35 // pred_fallthru
          _
        // Predicated region
        $region45: #{dino_forward.1} parent=35 // pred_check
          %p328 = pneg %p178
        $region46: #{dino_forward.1} parent=35 // pred_check_branch
          %330 = sbr.rel (%p328) target = $region48
        $region47: #{dino_forward.1} parent=35 // pred_region
          %s331 = sand.u32 %s168, 1
          %s332 = scalar_lea.sflag [#allocation4], %s331
          %s333 = sand.u32 %s168, 1
          %s334 = smul.addr %s333, 64
          %s335 = scalar_lea.vmem [#allocation3], %s334
          %s337 = ssub.s32 1024, 1024
          %338 = vsyncadd %s332, %s337
          %s339 = smul.addr %s22, 16
          %s340 = smul.addr %s339, 64
          %s341 = scalar_lea.hbm %s6, %s340
          %s342 = sshll.u32 %s335, 4
          %s343 = int_to_ptr.vmem [resolvable:$true] %s342
          %348 = dma.hbm_to_vmem [thread:$0]  %s341, 1024, %s343, %s332, 64, 64, 4
        $region48: #{dino_forward.1} parent=35 // pred_fallthru
          _
        // Predicated region
        $region49: #{dino_forward.1} parent=35 // pred_check
          %p349 = pneg %p204
        $region50: #{dino_forward.1} parent=35 // pred_check_branch
          %351 = sbr.rel (%p349) target = $region52
        $region51: #{dino_forward.1} parent=35 // pred_region
          %s352 = sand.u32 %s194, 1
          %s353 = scalar_lea.sflag [#allocation6], %s352
          %s354 = sand.u32 %s194, 1
          %s355 = smul.addr %s354, 64
          %s356 = scalar_lea.vmem [#allocation5], %s355
          %s358 = ssub.s32 1024, 1024
          %359 = vsyncadd %s353, %s358
          %s360 = smul.addr %s22, 16
          %s361 = smul.addr %s360, 64
          %s362 = scalar_lea.hbm %s7, %s361
          %s363 = sshll.u32 %s356, 4
          %s364 = int_to_ptr.vmem [resolvable:$true] %s363
          %369 = dma.hbm_to_vmem [thread:$0]  %s362, 1024, %s364, %s353, 64, 64, 4
        $region52: #{dino_forward.1} parent=35 // pred_fallthru
          _
        // Predicated region
        $region53: #{dino_forward.1} parent=35 // pred_check
          %p370 = pneg %p230
        $region54: #{dino_forward.1} parent=35 // pred_check_branch
          %372 = sbr.rel (%p370) target = $region56
        $region55: #{dino_forward.1} parent=35 // pred_region
          %p373 = scmp.lt.s32.totalorder %s22, 1
          %s374 = scalar_select %p373, %s22, 1
          %s375 = smul.addr %s374, 2
          %s376 = smul.addr %s375, 8
          %s377 = scalar_lea.vmem %s8, %s376
        $region56: #{dino_forward.1} parent=35 // pred_fallthru
          _
      $region36: #{dino_forward.1} parent=5 // pred_fallthru
        _
      %p378 = scmp.le.s32.totalorder 1, %s22
      %p379 = scmp.lt.s32.totalorder %s22, 3
      %p380 = pnand %p378, %p379
      %p381 = pneg %p380
      // Predicated region
      $region57: #{dino_forward.1} parent=5 // pred_check
        _
      $region58: #{dino_forward.1} parent=5 // pred_check_branch
        %383 = sbr.rel (%p380) target = $region60
      $region59: #{dino_forward.1} parent=5 // pred_region
        %s384 = ssub.s32 %s22, 1
        %s385 = sand.u32 %s171, 1
        %s386 = scalar_lea.sflag [#allocation4], %s385
        %s387 = sand.u32 %s171, 1
        %s388 = smul.addr %s387, 64
        %s389 = scalar_lea.vmem [#allocation3], %s388
        // Predicated region
        $region61: #{dino_forward.1} parent=59 // pred_check
          %p390 = pneg %p184
        $region62: #{dino_forward.1} parent=59 // pred_check_branch
          %392 = sbr.rel (%p390) target = $region64
        $region63: #{dino_forward.1} parent=59 // pred_region
          %393 = dma.done %s386, 1024
        $region64: #{dino_forward.1} parent=59 // pred_fallthru
          _
        %s394 = sand.u32 %s197, 1
        %s395 = scalar_lea.sflag [#allocation6], %s394
        %s396 = sand.u32 %s197, 1
        %s397 = smul.addr %s396, 64
        %s398 = scalar_lea.vmem [#allocation5], %s397
        // Predicated region
        $region65: #{dino_forward.1} parent=59 // pred_check
          %p399 = pneg %p210
        $region66: #{dino_forward.1} parent=59 // pred_check_branch
          %401 = sbr.rel (%p399) target = $region68
        $region67: #{dino_forward.1} parent=59 // pred_region
          %402 = dma.done %s395, 1024
        $region68: #{dino_forward.1} parent=59 // pred_fallthru
          _
        %p403 = pneg %p43
        %p404 = pneg %p40
        %p405 = pneg %p64
        %p406 = pneg %p61
        %p407 = pneg %p85
        %p408 = pneg %p82
        %p409 = pneg %p106
        %p410 = pneg %p103
        %p411 = scmp.lt.s32.totalorder %s27, 1
        %s412 = scalar_select %p411, %s27, 1
        %s413 = smul.addr %s412, 48
        %s414 = smul.addr %s413, 4
        %s415 = scalar_lea.vmem %s4, %s414
        %p416 = pneg %p132
        %p417 = pneg %p129
        %p418 = scmp.lt.s32.totalorder %s27, 1
        %s419 = scalar_select %p418, %s27, 1
        %s420 = smul.addr %s419, 16
        %s421 = smul.addr %s420, 4
        %s422 = scalar_lea.vmem %s5, %s421
        %p423 = pneg %p158
        %p424 = pneg %p155
        %s425 = sand.u32 %s171, 1
        %s426 = scalar_lea.sflag [#allocation4], %s425
        %s427 = sand.u32 %s171, 1
        %s428 = smul.addr %s427, 64
        %s429 = scalar_lea.vmem [#allocation3], %s428
        %p430 = pneg %p184
        %p431 = pneg %p181
        %s432 = sand.u32 %s197, 1
        %s433 = scalar_lea.sflag [#allocation6], %s432
        %s434 = sand.u32 %s197, 1
        %s435 = smul.addr %s434, 64
        %s436 = scalar_lea.vmem [#allocation5], %s435
        %p437 = pneg %p210
        %p438 = pneg %p207
        %p439 = scmp.lt.s32.totalorder %s27, 1
        %s440 = scalar_select %p439, %s27, 1
        %s441 = smul.addr %s440, 2
        %s442 = smul.addr %s441, 8
        %s443 = scalar_lea.vmem %s8, %s442
        %p444 = pneg %p236
        %p445 = pneg %p233
        %p446 = pneg %p257
        %p447 = pneg %p254
        %p448 = pneg %p278
        %p449 = pneg %p275
        %p450 = scmp.lt.s32.totalorder %s27, 1
        %s451 = scalar_select %p450, %s27, 1
        %s452 = smul.addr %s451, 48
        %s453 = smul.addr %s452, 4
        %s454 = scalar_lea.vmem %s4, %s453
        %p455 = scmp.lt.s32.totalorder %s27, 1
        %s456 = scalar_select %p455, %s27, 1
        %s457 = smul.addr %s456, 16
        %s458 = smul.addr %s457, 4
        %s459 = scalar_lea.vmem %s5, %s458
        %p460 = scmp.lt.s32.totalorder %s27, 1
        %s461 = scalar_select %p460, %s27, 1
        %s462 = smul.addr %s461, 2
        %s463 = smul.addr %s462, 8
        %s464 = scalar_lea.vmem %s8, %s463
        %v466 = vlaneseq
        %v467 = vand.u32 %v466, 127
        %vm468 = vcmp.lt.s32.totalorder %v467, 32
        %v469 = vsel %vm468, 1, 0
        %v470 = vcvt.s32.f32 %v469
        %vm471 = vcmp.ge.s32.totalorder %v467, 0
        %vm472 = vcmp.lt.s32.totalorder %v467, 64
        %vm473 = vmand %vm471, %vm472
        %v474 = vsel %vm473, 1, 0
        %v475 = vcvt.s32.f32 %v474
        %vm476 = vcmp.ge.s32.totalorder %v467, 64
        %vm477 = vcmp.lt.s32.totalorder %v467, 128
        %vm478 = vmand %vm476, %vm477
        %v479 = vsel %vm478, 1, 0
        %v480 = vcvt.s32.f32 %v479
        %p481 = scmp.eq.s32.totalorder %s27, 0
        // Predicated region
        $region69: #{dino_forward.1} parent=59 // pred_check
          %p482 = pneg %p481
        $region70: #{dino_forward.1} parent=59 // pred_check_branch
          %484 = sbr.rel (%p482) target = $region72
        $region71: #{dino_forward.1} parent=59 // pred_region
          %v485 = vld [vmem:[%s0] sm:$0xff]
          %v486 = vld [vmem:[%s0 + $0x8] sm:$0xff]
          %v487 = vld [vmem:[%s3] sm:$0xf]
          %v488 = vld [vmem:[%s3 + $0x4] sm:$0xf]
          %v489 = vld [vmem:[%s3 + $0x8] sm:$0xf]
          %v490 = vld [vmem:[%s3 + $0xc] sm:$0xf]
          %v491 = vld [vmem:[%s3 + $0x10] sm:$0xf]
          %v492 = vld [vmem:[%s3 + $0x14] sm:$0xf]
          %v493 = vld [vmem:[%s3 + $0x18] sm:$0xf]
          %v494 = vld [vmem:[%s3 + $0x1c] sm:$0xf]
          %v495 = vld [vmem:[%s3 + $0x20] sm:$0xf]
          %v496 = vld [vmem:[%s3 + $0x24] sm:$0xf]
          %v497 = vld [vmem:[%s3 + $0x28] sm:$0xf]
          %v498 = vld [vmem:[%s3 + $0x2c] sm:$0xf]
          %v499 = vld [vmem:[%s3 + $0x30] sm:$0xf]
          %v500 = vld [vmem:[%s3 + $0x34] sm:$0xf]
          %v501 = vld [vmem:[%s3 + $0x38] sm:$0xf]
          %v502 = vld [vmem:[%s3 + $0x3c] sm:$0xf]
          %v503 = vld [vmem:[%s3 + $0x40] sm:$0xf]
          %v504 = vld [vmem:[%s3 + $0x44] sm:$0xf]
          %v505 = vld [vmem:[%s3 + $0x48] sm:$0xf]
          %v506 = vld [vmem:[%s3 + $0x4c] sm:$0xf]
          %v507 = vld [vmem:[%s3 + $0x50] sm:$0xf]
          %v508 = vld [vmem:[%s3 + $0x54] sm:$0xf]
          %v509 = vld [vmem:[%s3 + $0x58] sm:$0xf]
          %v510 = vld [vmem:[%s3 + $0x5c] sm:$0xf]
          %v511 = vld [vmem:[%s3 + $0x60] sm:$0xf]
          %v512 = vld [vmem:[%s3 + $0x64] sm:$0xf]
          %v513 = vld [vmem:[%s3 + $0x68] sm:$0xf]
          %v514 = vld [vmem:[%s3 + $0x6c] sm:$0xf]
          %v515 = vld [vmem:[%s3 + $0x70] sm:$0xf]
          %v516 = vld [vmem:[%s3 + $0x74] sm:$0xf]
          %v517 = vld [vmem:[%s3 + $0x78] sm:$0xf]
          %v518 = vld [vmem:[%s3 + $0x7c] sm:$0xf]
          %v519 = vld [vmem:[%s1] sm:$0xff]
          %v520 = vld [vmem:[%s1 + $0x8] sm:$0xff]
          %v523 = vunpack.c.l.b16 %v485
          %v524 = vunpack.c.h.b16 %v485
          %v525 = vunpack.c.l.b16 %v486
          %v526 = vunpack.c.h.b16 %v486
          %v527 = vpack.c.b16 %v525, %v523
          %v528 = vpack.c.b16 %v526, %v524
          %v563 = vunpack.c.l.b16 %v487
          %v564 = vunpack.c.l.b16 %v488
          %v565 = vunpack.c.l.b16 %v489
          %v566 = vunpack.c.l.b16 %v490
          %v567 = vunpack.c.l.b16 %v491
          %v568 = vunpack.c.l.b16 %v492
          %v569 = vunpack.c.l.b16 %v493
          %v570 = vunpack.c.l.b16 %v494
          %v571 = vunpack.c.l.b16 %v495
          %v572 = vunpack.c.l.b16 %v496
          %v573 = vunpack.c.l.b16 %v497
          %v574 = vunpack.c.l.b16 %v498
          %v575 = vunpack.c.l.b16 %v499
          %v576 = vunpack.c.l.b16 %v500
          %v577 = vunpack.c.l.b16 %v501
          %v578 = vunpack.c.l.b16 %v502
          %v579 = vunpack.c.l.b16 %v503
          %v580 = vunpack.c.l.b16 %v504
          %v581 = vunpack.c.l.b16 %v505
          %v582 = vunpack.c.l.b16 %v506
          %v583 = vunpack.c.l.b16 %v507
          %v584 = vunpack.c.l.b16 %v508
          %v585 = vunpack.c.l.b16 %v509
          %v586 = vunpack.c.l.b16 %v510
          %v587 = vunpack.c.l.b16 %v511
          %v588 = vunpack.c.l.b16 %v512
          %v589 = vunpack.c.l.b16 %v513
          %v590 = vunpack.c.l.b16 %v514
          %v591 = vunpack.c.l.b16 %v515
          %v592 = vunpack.c.l.b16 %v516
          %v593 = vunpack.c.l.b16 %v517
          %v594 = vunpack.c.l.b16 %v518
          %v595 = vpack.c.b16 %v564, %v563
          %v596 = vpack.c.b16 %v566, %v565
          %v597 = vpack.c.b16 %v568, %v567
          %v598 = vpack.c.b16 %v570, %v569
          %v599 = vpack.c.b16 %v572, %v571
          %v600 = vpack.c.b16 %v574, %v573
          %v601 = vpack.c.b16 %v576, %v575
          %v602 = vpack.c.b16 %v578, %v577
          %v603 = vpack.c.b16 %v580, %v579
          %v604 = vpack.c.b16 %v582, %v581
          %v605 = vpack.c.b16 %v584, %v583
          %v606 = vpack.c.b16 %v586, %v585
          %v607 = vpack.c.b16 %v588, %v587
          %v608 = vpack.c.b16 %v590, %v589
          %v609 = vpack.c.b16 %v592, %v591
          %v610 = vpack.c.b16 %v594, %v593
          %627 = vmatprep.subr.bf16.mxu0 0
          %628 = vmatpush1.bf16.msra.mxu0 %v595
          %629 = vmatprep.subr.bf16.mxu0 0
          %630 = vmatpush1.bf16.msra.mxu0 %v596
          %631 = vmatprep.subr.bf16.mxu0 0
          %632 = vmatpush1.bf16.msra.mxu0 %v597
          %633 = vmatprep.subr.bf16.mxu0 0
          %634 = vmatpush1.bf16.msra.mxu0 %v598
          %635 = vmatprep.subr.bf16.mxu0 0
          %636 = vmatpush1.bf16.msra.mxu0 %v599
          %637 = vmatprep.subr.bf16.mxu0 0
          %638 = vmatpush1.bf16.msra.mxu0 %v600
          %639 = vmatprep.subr.bf16.mxu0 0
          %640 = vmatpush1.bf16.msra.mxu0 %v601
          %641 = vmatprep.subr.bf16.mxu0 0
          %642 = vmatpush1.bf16.msra.mxu0 %v602
          %643 = vmatprep.subr.bf16.mxu0 0
          %644 = vmatpush1.bf16.msra.mxu0 %v603
          %645 = vmatprep.subr.bf16.mxu0 0
          %646 = vmatpush1.bf16.msra.mxu0 %v604
          %647 = vmatprep.subr.bf16.mxu0 0
          %648 = vmatpush1.bf16.msra.mxu0 %v605
          %649 = vmatprep.subr.bf16.mxu0 0
          %650 = vmatpush1.bf16.msra.mxu0 %v606
          %651 = vmatprep.subr.bf16.mxu0 0
          %652 = vmatpush1.bf16.msra.mxu0 %v607
          %653 = vmatprep.subr.bf16.mxu0 0
          %654 = vmatpush1.bf16.msra.mxu0 %v608
          %655 = vmatprep.subr.bf16.mxu0 0
          %656 = vmatpush1.bf16.msra.mxu0 %v609
          %657 = vmatprep.subr.bf16.mxu0 0
          %658 = vmatpush1.bf16.msra.mxu0 %v610
          %659 = vmatprep.mubr.bf16.mxu0 %v528
          %660 = vmatmul.mubr.bf16.gmra.mrb[0].mxu0 %v527
          %v661 = vpop.f32.mrb[0].mxu0
          %v662 = vadd.f32 %v519, %v661
          %v663 = vpop.f32.mrb[0].mxu0
          %v664 = vpop.f32.mrb[0].mxu0
          %v665 = vadd.f32 %v520, %v664
          %v666 = vpop.f32.mrb[0].mxu0
          %667 = vdwg.mxu0
          %668 = vst [vmem:[#allocation2] sm:$0xff] %v662
          %669 = vst [vmem:[#allocation2 + $0x8] sm:$0xff] %v665
        $region72: #{dino_forward.1} parent=59 // pred_fallthru
          _
        %v670 = vld [vmem:[#allocation2] sm:$0xff]
        %v671 = vld [vmem:[#allocation2 + $0x8] sm:$0xff]
        %v672 = vld [vmem:[%s464] sm:$0xff]
        %v673 = vld [vmem:[%s464 + $0x8] sm:$0x3]
        %674 = vadd.xlane.f32.xlu0 %v670
        %v675 = vpop.xlane.xlu0 %674
        %676 = vadd.xlane.f32.xlu0 %v671
        %v677 = vpop.xlane.xlu0 %676
        %v678 = vmul.f32 %v675, 0.03125
        %v679 = vmul.f32 %v677, 0.03125
        %v680 = vsub.f32 %v670, %v678
        %v681 = vsub.f32 %v671, %v679
        %v682 = vmul.f32 %v680, %v470
        %v683 = vmul.f32 %v681, %v470
        %v684 = vmul.f32 %v682, %v682
        %v685 = vmul.f32 %v683, %v683
        %686 = vadd.xlane.f32.xlu0 %v684
        %v687 = vpop.xlane.xlu0 %686
        %688 = vadd.xlane.f32.xlu0 %v685
        %v689 = vpop.xlane.xlu0 %688
        %v690 = vmul.f32 %v687, 0.03125
        %v691 = vmul.f32 %v689, 0.03125
        %v692 = vadd.f32 %v690, 1e-12
        %v693 = vadd.f32 %v691, 1e-12
        %v694 = vrsqrt.pop %v692
        %v695 = vrsqrt.pop %v693
        %v696 = vmul.f32 %v682, %v694
        %v697 = vmul.f32 %v683, %v695
        %v698 = vlaneseq
        %v699 = vshrl.u32 %v698, 7
        %v700 = vsub.s32 0, %v699
        %v701 = vrot.slane %v672, %v700
        %v702 = vmul.f32 %v696, %v701
        %v703 = vmul.f32 %v697, %v701
        %v704 = vlaneseq
        %v705 = vshrl.u32 %v704, 7
        %v706 = vsub.s32 1, %v705
        %v707 = vrot.slane %v672, %v706
        %v708 = vadd.f32 %v702, %v707
        %v709 = vadd.f32 %v703, %v707
        %v710 = vpack.c.bf16 %v709, %v708
        %v711 = vld [vmem:[%s454] sm:$0xff]
        %v712 = vld [vmem:[%s454 + $0x8] sm:$0xf]
        %v713 = vld [vmem:[%s454 + $0xc] sm:$0xff]
        %v714 = vld [vmem:[%s454 + $0x14] sm:$0xf]
        %v715 = vld [vmem:[%s454 + $0x18] sm:$0xff]
        %v716 = vld [vmem:[%s454 + $0x20] sm:$0xf]
        %v717 = vld [vmem:[%s454 + $0x24] sm:$0xff]
        %v718 = vld [vmem:[%s454 + $0x2c] sm:$0xf]
        %v719 = vld [vmem:[%s454 + $0x30] sm:$0xff]
        %v720 = vld [vmem:[%s454 + $0x38] sm:$0xf]
        %v721 = vld [vmem:[%s454 + $0x3c] sm:$0xff]
        %v722 = vld [vmem:[%s454 + $0x44] sm:$0xf]
        %v723 = vld [vmem:[%s454 + $0x48] sm:$0xff]
        %v724 = vld [vmem:[%s454 + $0x50] sm:$0xf]
        %v725 = vld [vmem:[%s454 + $0x54] sm:$0xff]
        %v726 = vld [vmem:[%s454 + $0x5c] sm:$0xf]
        %v727 = vld [vmem:[%s454 + $0x60] sm:$0xff]
        %v728 = vld [vmem:[%s454 + $0x68] sm:$0xf]
        %v729 = vld [vmem:[%s454 + $0x6c] sm:$0xff]
        %v730 = vld [vmem:[%s454 + $0x74] sm:$0xf]
        %v731 = vld [vmem:[%s454 + $0x78] sm:$0xff]
        %v732 = vld [vmem:[%s454 + $0x80] sm:$0xf]
        %v733 = vld [vmem:[%s454 + $0x84] sm:$0xff]
        %v734 = vld [vmem:[%s454 + $0x8c] sm:$0xf]
        %v735 = vld [vmem:[%s454 + $0x90] sm:$0xff]
        %v736 = vld [vmem:[%s454 + $0x98] sm:$0xf]
        %v737 = vld [vmem:[%s454 + $0x9c] sm:$0xff]
        %v738 = vld [vmem:[%s454 + $0xa4] sm:$0xf]
        %v739 = vld [vmem:[%s454 + $0xa8] sm:$0xff]
        %v740 = vld [vmem:[%s454 + $0xb0] sm:$0xf]
        %v741 = vld [vmem:[%s454 + $0xb4] sm:$0xff]
        %v742 = vld [vmem:[%s454 + $0xbc] sm:$0xf]
        %v775 = vunpack.c.l.b16 %v711
        %v776 = vunpack.c.h.b16 %v711
        %v777 = vunpack.c.l.b16 %v712
        %v778 = vunpack.c.l.b16 %v713
        %v779 = vunpack.c.h.b16 %v713
        %v780 = vunpack.c.l.b16 %v714
        %v781 = vunpack.c.l.b16 %v715
        %v782 = vunpack.c.h.b16 %v715
        %v783 = vunpack.c.l.b16 %v716
        %v784 = vunpack.c.l.b16 %v717
        %v785 = vunpack.c.h.b16 %v717
        %v786 = vunpack.c.l.b16 %v718
        %v787 = vunpack.c.l.b16 %v719
        %v788 = vunpack.c.h.b16 %v719
        %v789 = vunpack.c.l.b16 %v720
        %v790 = vunpack.c.l.b16 %v721
        %v791 = vunpack.c.h.b16 %v721
        %v792 = vunpack.c.l.b16 %v722
        %v793 = vunpack.c.l.b16 %v723
        %v794 = vunpack.c.h.b16 %v723
        %v795 = vunpack.c.l.b16 %v724
        %v796 = vunpack.c.l.b16 %v725
        %v797 = vunpack.c.h.b16 %v725
        %v798 = vunpack.c.l.b16 %v726
        %v799 = vunpack.c.l.b16 %v727
        %v800 = vunpack.c.h.b16 %v727
        %v801 = vunpack.c.l.b16 %v728
        %v802 = vunpack.c.l.b16 %v729
        %v803 = vunpack.c.h.b16 %v729
        %v804 = vunpack.c.l.b16 %v730
        %v805 = vunpack.c.l.b16 %v731
        %v806 = vunpack.c.h.b16 %v731
        %v807 = vunpack.c.l.b16 %v732
        %v808 = vunpack.c.l.b16 %v733
        %v809 = vunpack.c.h.b16 %v733
        %v810 = vunpack.c.l.b16 %v734
        %v811 = vunpack.c.l.b16 %v735
        %v812 = vunpack.c.h.b16 %v735
        %v813 = vunpack.c.l.b16 %v736
        %v814 = vunpack.c.l.b16 %v737
        %v815 = vunpack.c.h.b16 %v737
        %v816 = vunpack.c.l.b16 %v738
        %v817 = vunpack.c.l.b16 %v739
        %v818 = vunpack.c.h.b16 %v739
        %v819 = vunpack.c.l.b16 %v740
        %v820 = vunpack.c.l.b16 %v741
        %v821 = vunpack.c.h.b16 %v741
        %v822 = vunpack.c.l.b16 %v742
        %v823 = vpack.c.b16 %v778, %v775
        %v824 = vpack.c.b16 %v779, %v776
        %v825 = vpack.c.b16 %v780, %v777
        %v826 = vpack.c.b16 %v784, %v781
        %v827 = vpack.c.b16 %v785, %v782
        %v828 = vpack.c.b16 %v786, %v783
        %v829 = vpack.c.b16 %v790, %v787
        %v830 = vpack.c.b16 %v791, %v788
        %v831 = vpack.c.b16 %v792, %v789
        %v832 = vpack.c.b16 %v796, %v793
        %v833 = vpack.c.b16 %v797, %v794
        %v834 = vpack.c.b16 %v798, %v795
        %v835 = vpack.c.b16 %v802, %v799
        %v836 = vpack.c.b16 %v803, %v800
        %v837 = vpack.c.b16 %v804, %v801
        %v838 = vpack.c.b16 %v808, %v805
        %v839 = vpack.c.b16 %v809, %v806
        %v840 = vpack.c.b16 %v810, %v807
        %v841 = vpack.c.b16 %v814, %v811
        %v842 = vpack.c.b16 %v815, %v812
        %v843 = vpack.c.b16 %v816, %v813
        %v844 = vpack.c.b16 %v820, %v817
        %v845 = vpack.c.b16 %v821, %v818
        %v846 = vpack.c.b16 %v822, %v819
        %871 = vmatprep.subr.bf16.mxu0 %v824
        %872 = vmatpush1.bf16.msra.mxu0 %v823
        %873 = vmatprep.subr.bf16.mxu0 %v827
        %874 = vmatpush1.bf16.msra.mxu0 %v826
        %875 = vmatprep.subr.bf16.mxu0 %v830
        %876 = vmatpush1.bf16.msra.mxu0 %v829
        %877 = vmatprep.subr.bf16.mxu0 %v833
        %878 = vmatpush1.bf16.msra.mxu0 %v832
        %879 = vmatprep.subr.bf16.mxu0 %v836
        %880 = vmatpush1.bf16.msra.mxu0 %v835
        %881 = vmatprep.subr.bf16.mxu0 %v839
        %882 = vmatpush1.bf16.msra.mxu0 %v838
        %883 = vmatprep.subr.bf16.mxu0 %v842
        %884 = vmatpush1.bf16.msra.mxu0 %v841
        %885 = vmatprep.subr.bf16.mxu0 %v845
        %886 = vmatpush1.bf16.msra.mxu0 %v844
        %887 = vmatprep.subr.bf16.mxu0 0
        %888 = vmatpush1.bf16.msra.mxu0 0
        %889 = vmatprep.subr.bf16.mxu0 0
        %890 = vmatpush1.bf16.msra.mxu0 0
        %891 = vmatprep.subr.bf16.mxu0 0
        %892 = vmatpush1.bf16.msra.mxu0 0
        %893 = vmatprep.subr.bf16.mxu0 0
        %894 = vmatpush1.bf16.msra.mxu0 0
        %895 = vmatprep.subr.bf16.mxu0 0
        %896 = vmatpush1.bf16.msra.mxu0 0
        %897 = vmatprep.subr.bf16.mxu0 0
        %898 = vmatpush1.bf16.msra.mxu0 0
        %899 = vmatprep.subr.bf16.mxu0 0
        %900 = vmatpush1.bf16.msra.mxu0 0
        %901 = vmatprep.subr.bf16.mxu0 0
        %902 = vmatpush1.bf16.msra.mxu0 0
        %903 = vmatprep.mubr.bf16.mxu0 0
        %904 = vmatmul.mubr.bf16.gmra.mrb[0].mxu0 %v710
        %v905 = vpop.f32.mrb[0].mxu0
        %v906 = vadd.f32 0.0, %v905
        %v907 = vpop.f32.mrb[0].mxu0
        %v908 = vadd.f32 0.0, %v907
        %v909 = vpop.f32.mrb[0].mxu0
        %v910 = vadd.f32 0.0, %v909
        %v911 = vpop.f32.mrb[0].mxu0
        %v912 = vadd.f32 0.0, %v911
        %913 = vdwg.mxu0
        %914 = vmatprep.subr.bf16.mxu0 0
        %915 = vmatpush1.bf16.msra.mxu0 %v825
        %916 = vmatprep.subr.bf16.mxu0 0
        %917 = vmatpush1.bf16.msra.mxu0 %v828
        %918 = vmatprep.subr.bf16.mxu0 0
        %919 = vmatpush1.bf16.msra.mxu0 %v831
        %920 = vmatprep.subr.bf16.mxu0 0
        %921 = vmatpush1.bf16.msra.mxu0 %v834
        %922 = vmatprep.subr.bf16.mxu0 0
        %923 = vmatpush1.bf16.msra.mxu0 %v837
        %924 = vmatprep.subr.bf16.mxu0 0
        %925 = vmatpush1.bf16.msra.mxu0 %v840
        %926 = vmatprep.subr.bf16.mxu0 0
        %927 = vmatpush1.bf16.msra.mxu0 %v843
        %928 = vmatprep.subr.bf16.mxu0 0
        %929 = vmatpush1.bf16.msra.mxu0 %v846
        %930 = vmatprep.subr.bf16.mxu0 0
        %931 = vmatpush1.bf16.msra.mxu0 0
        %932 = vmatprep.subr.bf16.mxu0 0
        %933 = vmatpush1.bf16.msra.mxu0 0
        %934 = vmatprep.subr.bf16.mxu0 0
        %935 = vmatpush1.bf16.msra.mxu0 0
        %936 = vmatprep.subr.bf16.mxu0 0
        %937 = vmatpush1.bf16.msra.mxu0 0
        %938 = vmatprep.subr.bf16.mxu0 0
        %939 = vmatpush1.bf16.msra.mxu0 0
        %940 = vmatprep.subr.bf16.mxu0 0
        %941 = vmatpush1.bf16.msra.mxu0 0
        %942 = vmatprep.subr.bf16.mxu0 0
        %943 = vmatpush1.bf16.msra.mxu0 0
        %944 = vmatprep.subr.bf16.mxu0 0
        %945 = vmatpush1.bf16.msra.mxu0 0
        %946 = vmatprep.mubr.bf16.mxu0 0
        %947 = vmatmul.mubr.bf16.gmra.mrb[0].mxu0 %v710
        %v948 = vpop.f32.mrb[0].mxu0
        %v949 = vadd.f32 0.0, %v948
        %v950 = vpop.f32.mrb[0].mxu0
        %v951 = vpop.f32.mrb[0].mxu0
        %v952 = vadd.f32 0.0, %v951
        %v953 = vpop.f32.mrb[0].mxu0
        %954 = vdwg.mxu0
        %v955 = vlaneseq
        %v956 = vshrl.u32 %v955, 7
        %v957 = vsub.s32 2, %v956
        %v958 = vrot.slane %v672, %v957
        %v959 = vadd.f32 %v906, %v958
        %v960 = vadd.f32 %v910, %v958
        %v961 = vlaneseq
        %v962 = vshrl.u32 %v961, 7
        %v963 = vsub.s32 3, %v962
        %v964 = vrot.slane %v672, %v963
        %v965 = vadd.f32 %v908, %v964
        %v966 = vadd.f32 %v912, %v964
        %v967 = vlaneseq
        %v968 = vshrl.u32 %v967, 7
        %v969 = vsub.s32 4, %v968
        %v970 = vrot.slane %v672, %v969
        %v971 = vadd.f32 %v949, %v970
        %v972 = vadd.f32 %v952, %v970
        %v973 = vpack.c.bf16 %v960, %v959
        %v974 = vld [vmem:[%s2] sm:$0xff]
        %v975 = vld [vmem:[%s2 + $0x8] sm:$0xff]
        %v976 = vmul.f32 %v965, %v475
        %v977 = vmul.f32 %v966, %v475
        %v978 = vpack.c.bf16 %v977, %v976
        %979 = vmatprep.subr.bf16.mxu0 0
        %980 = vmatpush1.bf16.xpose.msra.mxu0 %v978
        %981 = vmatprep.subr.bf16.mxu0 0
        %982 = vmatpush1.bf16.xpose.msra.mxu0 0
        %983 = vmatprep.subr.bf16.mxu0 0
        %984 = vmatpush1.bf16.xpose.msra.mxu0 0
        %985 = vmatprep.subr.bf16.mxu0 0
        %986 = vmatpush1.bf16.xpose.msra.mxu0 0
        %987 = vmatprep.subr.bf16.mxu0 0
        %988 = vmatpush1.bf16.xpose.msra.mxu0 0
        %989 = vmatprep.subr.bf16.mxu0 0
        %990 = vmatpush1.bf16.xpose.msra.mxu0 0
        %991 = vmatprep.subr.bf16.mxu0 0
        %992 = vmatpush1.bf16.xpose.msra.mxu0 0
        %993 = vmatprep.subr.bf16.mxu0 0
        %994 = vmatpush1.bf16.xpose.msra.mxu0 0
        %995 = vmatprep.subr.bf16.mxu0 0
        %996 = vmatpush1.bf16.xpose.msra.mxu0 0
        %997 = vmatprep.subr.bf16.mxu0 0
        %998 = vmatpush1.bf16.xpose.msra.mxu0 0
        %999 = vmatprep.subr.bf16.mxu0 0
        %1000 = vmatpush1.bf16.xpose.msra.mxu0 0
        %1001 = vmatprep.subr.bf16.mxu0 0
        %1002 = vmatpush1.bf16.xpose.msra.mxu0 0
        %1003 = vmatprep.subr.bf16.mxu0 0
        %1004 = vmatpush1.bf16.xpose.msra.mxu0 0
        %1005 = vmatprep.subr.bf16.mxu0 0
        %1006 = vmatpush1.bf16.xpose.msra.mxu0 0
        %1007 = vmatprep.subr.bf16.mxu0 0
        %1008 = vmatpush1.bf16.xpose.msra.mxu0 0
        %1009 = vmatprep.subr.bf16.mxu0 0
        %1010 = vmatpush1.bf16.xpose.msra.mxu0 0
        %1011 = vmatprep.mubr.bf16.mxu0 0
        %1012 = vmatmul.mubr.bf16.gmra.mrb[0].mxu0 %v973
        %v1013 = vpop.f32.mrb[0].mxu0
        %v1014 = vadd.f32 0.0, %v1013
        %v1015 = vpop.f32.mrb[0].mxu0
        %v1016 = vpop.f32.mrb[0].mxu0
        %v1017 = vadd.f32 0.0, %v1016
        %v1018 = vpop.f32.mrb[0].mxu0
        %1019 = vdwg.mxu0
        %v1020 = vmul.f32 %v1014, 0.25
        %v1021 = vmul.f32 %v1017, 0.25
        %v1022 = vadd.f32 %v1020, %v974
        %v1023 = vadd.f32 %v1021, %v975
        %vm1024 = vcmask 130048
        %v1025 = vsel %vm1024, %v1022, -inf
        %1026 = vmax.xlane.f32.xlu0 %v1025
        %v1027 = vpop.xlane.xlu0 %1026
        %v1028 = vsel %vm1024, %v1023, -inf
        %1029 = vmax.xlane.f32.xlu0 %v1028
        %v1030 = vpop.xlane.xlu0 %1029
        %v1031 = vsub.f32 %v1022, %v1027
        %v1032 = vsub.f32 %v1023, %v1030
        %v1033 = vmul.f32 %v1031, 1.442695
        %v1034 = vpow.pop %v1033
        %v1035 = vmul.f32 %v1032, 1.442695
        %v1036 = vpow.pop %v1035
        %v1037 = vsel %vm1024, %v1034, 0.0
        %1038 = vadd.xlane.f32.xlu0 %v1037
        %v1039 = vpop.xlane.xlu0 %1038
        %v1040 = vsel %vm1024, %v1036, 0.0
        %1041 = vadd.xlane.f32.xlu0 %v1040
        %v1042 = vpop.xlane.xlu0 %1041
        %v1043 = vrcp.pop %v1039
        %v1044 = vmul.f32 %v1034, %v1043
        %v1045 = vrcp.pop %v1042
        %v1046 = vmul.f32 %v1036, %v1045
        %v1047 = vmul.f32 %v971, %v475
        %v1048 = vmul.f32 %v972, %v475
        %v1049 = vpack.c.bf16 %v1048, %v1047
        %v1050 = vpack.c.bf16 %v1046, %v1044
        %v1051 = vmul.f32 %v965, %v480
        %v1052 = vmul.f32 %v966, %v480
        %v1053 = vpack.c.bf16 %v1052, %v1051
        %1054 = vmatprep.subr.bf16.mxu0 0
        %1055 = vmatpush1.bf16.xpose.msra.mxu0 %v1053
        %1056 = vmatprep.subr.bf16.mxu0 0
        %1057 = vmatpush1.bf16.xpose.msra.mxu0 0
        %1058 = vmatprep.subr.bf16.mxu0 0
        %1059 = vmatpush1.bf16.xpose.msra.mxu0 0
        %1060 = vmatprep.subr.bf16.mxu0 0
        %1061 = vmatpush1.bf16.xpose.msra.mxu0 0
        %1062 = vmatprep.subr.bf16.mxu0 0
        %1063 = vmatpush1.bf16.xpose.msra.mxu0 0
        %1064 = vmatprep.subr.bf16.mxu0 0
        %1065 = vmatpush1.bf16.xpose.msra.mxu0 0
        %1066 = vmatprep.subr.bf16.mxu0 0
        %1067 = vmatpush1.bf16.xpose.msra.mxu0 0
        %1068 = vmatprep.subr.bf16.mxu0 0
        %1069 = vmatpush1.bf16.xpose.msra.mxu0 0
        %1070 = vmatprep.subr.bf16.mxu0 0
        %1071 = vmatpush1.bf16.xpose.msra.mxu0 0
        %1072 = vmatprep.subr.bf16.mxu0 0
        %1073 = vmatpush1.bf16.xpose.msra.mxu0 0
        %1074 = vmatprep.subr.bf16.mxu0 0
        %1075 = vmatpush1.bf16.xpose.msra.mxu0 0
        %1076 = vmatprep.subr.bf16.mxu0 0
        %1077 = vmatpush1.bf16.xpose.msra.mxu0 0
        %1078 = vmatprep.subr.bf16.mxu0 0
        %1079 = vmatpush1.bf16.xpose.msra.mxu0 0
        %1080 = vmatprep.subr.bf16.mxu0 0
        %1081 = vmatpush1.bf16.xpose.msra.mxu0 0
        %1082 = vmatprep.subr.bf16.mxu0 0
        %1083 = vmatpush1.bf16.xpose.msra.mxu0 0
        %1084 = vmatprep.subr.bf16.mxu0 0
        %1085 = vmatpush1.bf16.xpose.msra.mxu0 0
        %1086 = vmatprep.mubr.bf16.mxu0 0
        %1087 = vmatmul.mubr.bf16.gmra.mrb[0].mxu0 %v973
        %v1088 = vpop.f32.mrb[0].mxu0
        %v1089 = vadd.f32 0.0, %v1088
        %v1090 = vpop.f32.mrb[0].mxu0
        %v1091 = vpop.f32.mrb[0].mxu0
        %v1092 = vadd.f32 0.0, %v1091
        %v1093 = vpop.f32.mrb[0].mxu0
        %1094 = vdwg.mxu0
        %v1095 = vmul.f32 %v1089, 0.25
        %v1096 = vmul.f32 %v1092, 0.25
        %v1097 = vadd.f32 %v1095, %v974
        %v1098 = vadd.f32 %v1096, %v975
        %v1099 = vsel %vm1024, %v1097, -inf
        %1100 = vmax.xlane.f32.xlu0 %v1099
        %v1101 = vpop.xlane.xlu0 %1100
        %v1102 = vsel %vm1024, %v1098, -inf
        %1103 = vmax.xlane.f32.xlu0 %v1102
        %v1104 = vpop.xlane.xlu0 %1103
        %v1105 = vsub.f32 %v1097, %v1101
        %v1106 = vsub.f32 %v1098, %v1104
        %v1107 = vmul.f32 %v1105, 1.442695
        %v1108 = vpow.pop %v1107
        %v1109 = vmul.f32 %v1106, 1.442695
        %v1110 = vpow.pop %v1109
        %v1111 = vsel %vm1024, %v1108, 0.0
        %1112 = vadd.xlane.f32.xlu0 %v1111
        %v1113 = vpop.xlane.xlu0 %1112
        %v1114 = vsel %vm1024, %v1110, 0.0
        %1115 = vadd.xlane.f32.xlu0 %v1114
        %v1116 = vpop.xlane.xlu0 %1115
        %v1117 = vrcp.pop %v1113
        %v1118 = vmul.f32 %v1108, %v1117
        %v1119 = vrcp.pop %v1116
        %v1120 = vmul.f32 %v1110, %v1119
        %v1121 = vmul.f32 %v971, %v480
        %v1122 = vmul.f32 %v972, %v480
        %v1123 = vpack.c.bf16 %v1122, %v1121
        %v1124 = vpack.c.bf16 %v1120, %v1118
        %v1126 = vsel %vm1024, %v1124, 0
        %1128 = vmatprep.subr.bf16.mxu0 0
        %1129 = vmatpush1.bf16.msra.mxu0 %v1123
        %1130 = vmatprep.subr.bf16.mxu0 0
        %1131 = vmatpush1.bf16.msra.mxu0 0
        %1132 = vmatprep.subr.bf16.mxu0 0
        %1133 = vmatpush1.bf16.msra.mxu0 0
        %1134 = vmatprep.subr.bf16.mxu0 0
        %1135 = vmatpush1.bf16.msra.mxu0 0
        %1136 = vmatprep.subr.bf16.mxu0 0
        %1137 = vmatpush1.bf16.msra.mxu0 0
        %1138 = vmatprep.subr.bf16.mxu0 0
        %1139 = vmatpush1.bf16.msra.mxu0 0
        %1140 = vmatprep.subr.bf16.mxu0 0
        %1141 = vmatpush1.bf16.msra.mxu0 0
        %1142 = vmatprep.subr.bf16.mxu0 0
        %1143 = vmatpush1.bf16.msra.mxu0 0
        %1144 = vmatprep.subr.bf16.mxu0 0
        %1145 = vmatpush1.bf16.msra.mxu0 0
        %1146 = vmatprep.subr.bf16.mxu0 0
        %1147 = vmatpush1.bf16.msra.mxu0 0
        %1148 = vmatprep.subr.bf16.mxu0 0
        %1149 = vmatpush1.bf16.msra.mxu0 0
        %1150 = vmatprep.subr.bf16.mxu0 0
        %1151 = vmatpush1.bf16.msra.mxu0 0
        %1152 = vmatprep.subr.bf16.mxu0 0
        %1153 = vmatpush1.bf16.msra.mxu0 0
        %1154 = vmatprep.subr.bf16.mxu0 0
        %1155 = vmatpush1.bf16.msra.mxu0 0
        %1156 = vmatprep.subr.bf16.mxu0 0
        %1157 = vmatpush1.bf16.msra.mxu0 0
        %1158 = vmatprep.subr.bf16.mxu0 0
        %1159 = vmatpush1.bf16.msra.mxu0 0
        %1160 = vmatprep.mubr.bf16.mxu0 0
        %1161 = vmatmul.mubr.bf16.gmra.mrb[0].mxu0 %v1126
        %v1162 = vpop.f32.mrb[0].mxu0
        %v1163 = vadd.f32 0.0, %v1162
        %v1164 = vpop.f32.mrb[0].mxu0
        %v1165 = vpop.f32.mrb[0].mxu0
        %v1166 = vadd.f32 0.0, %v1165
        %v1167 = vpop.f32.mrb[0].mxu0
        %1168 = vdwg.mxu0
        %v1170 = vsel %vm1024, %v1050, 0
        %1172 = vmatprep.subr.bf16.mxu0 0
        %1173 = vmatpush1.bf16.msra.mxu0 %v1049
        %1174 = vmatprep.subr.bf16.mxu0 0
        %1175 = vmatpush1.bf16.msra.mxu0 0
        %1176 = vmatprep.subr.bf16.mxu0 0
        %1177 = vmatpush1.bf16.msra.mxu0 0
        %1178 = vmatprep.subr.bf16.mxu0 0
        %1179 = vmatpush1.bf16.msra.mxu0 0
        %1180 = vmatprep.subr.bf16.mxu0 0
        %1181 = vmatpush1.bf16.msra.mxu0 0
        %1182 = vmatprep.subr.bf16.mxu0 0
        %1183 = vmatpush1.bf16.msra.mxu0 0
        %1184 = vmatprep.subr.bf16.mxu0 0
        %1185 = vmatpush1.bf16.msra.mxu0 0
        %1186 = vmatprep.subr.bf16.mxu0 0
        %1187 = vmatpush1.bf16.msra.mxu0 0
        %1188 = vmatprep.subr.bf16.mxu0 0
        %1189 = vmatpush1.bf16.msra.mxu0 0
        %1190 = vmatprep.subr.bf16.mxu0 0
        %1191 = vmatpush1.bf16.msra.mxu0 0
        %1192 = vmatprep.subr.bf16.mxu0 0
        %1193 = vmatpush1.bf16.msra.mxu0 0
        %1194 = vmatprep.subr.bf16.mxu0 0
        %1195 = vmatpush1.bf16.msra.mxu0 0
        %1196 = vmatprep.subr.bf16.mxu0 0
        %1197 = vmatpush1.bf16.msra.mxu0 0
        %1198 = vmatprep.subr.bf16.mxu0 0
        %1199 = vmatpush1.bf16.msra.mxu0 0
        %1200 = vmatprep.subr.bf16.mxu0 0
        %1201 = vmatpush1.bf16.msra.mxu0 0
        %1202 = vmatprep.subr.bf16.mxu0 0
        %1203 = vmatpush1.bf16.msra.mxu0 0
        %1204 = vmatprep.mubr.bf16.mxu0 0
        %1205 = vmatmul.mubr.bf16.gmra.mrb[0].mxu0 %v1170
        %v1206 = vpop.f32.mrb[0].mxu0
        %v1207 = vadd.f32 %v1163, %v1206
        %v1208 = vpop.f32.mrb[0].mxu0
        %v1209 = vpop.f32.mrb[0].mxu0
        %v1210 = vadd.f32 %v1166, %v1209
        %v1211 = vpop.f32.mrb[0].mxu0
        %1212 = vdwg.mxu0
        %v1213 = vpack.c.bf16 %v1210, %v1207
        %v1214 = vld [vmem:[%s459] sm:$0xf]
        %v1215 = vld [vmem:[%s459 + $0x4] sm:$0xf]
        %v1216 = vld [vmem:[%s459 + $0x8] sm:$0xf]
        %v1217 = vld [vmem:[%s459 + $0xc] sm:$0xf]
        %v1218 = vld [vmem:[%s459 + $0x10] sm:$0xf]
        %v1219 = vld [vmem:[%s459 + $0x14] sm:$0xf]
        %v1220 = vld [vmem:[%s459 + $0x18] sm:$0xf]
        %v1221 = vld [vmem:[%s459 + $0x1c] sm:$0xf]
        %v1222 = vld [vmem:[%s459 + $0x20] sm:$0xf]
        %v1223 = vld [vmem:[%s459 + $0x24] sm:$0xf]
        %v1224 = vld [vmem:[%s459 + $0x28] sm:$0xf]
        %v1225 = vld [vmem:[%s459 + $0x2c] sm:$0xf]
        %v1226 = vld [vmem:[%s459 + $0x30] sm:$0xf]
        %v1227 = vld [vmem:[%s459 + $0x34] sm:$0xf]
        %v1228 = vld [vmem:[%s459 + $0x38] sm:$0xf]
        %v1229 = vld [vmem:[%s459 + $0x3c] sm:$0xf]
        %v1230 = vlaneseq
        %v1231 = vshrl.u32 %v1230, 7
        %v1232 = vsub.s32 5, %v1231
        %v1233 = vrot.slane %v672, %v1232
        %v1250 = vunpack.c.l.b16 %v1214
        %v1251 = vunpack.c.l.b16 %v1215
        %v1252 = vunpack.c.l.b16 %v1216
        %v1253 = vunpack.c.l.b16 %v1217
        %v1254 = vunpack.c.l.b16 %v1218
        %v1255 = vunpack.c.l.b16 %v1219
        %v1256 = vunpack.c.l.b16 %v1220
        %v1257 = vunpack.c.l.b16 %v1221
        %v1258 = vunpack.c.l.b16 %v1222
        %v1259 = vunpack.c.l.b16 %v1223
        %v1260 = vunpack.c.l.b16 %v1224
        %v1261 = vunpack.c.l.b16 %v1225
        %v1262 = vunpack.c.l.b16 %v1226
        %v1263 = vunpack.c.l.b16 %v1227
        %v1264 = vunpack.c.l.b16 %v1228
        %v1265 = vunpack.c.l.b16 %v1229
        %v1266 = vpack.c.b16 %v1251, %v1250
        %v1267 = vpack.c.b16 %v1253, %v1252
        %v1268 = vpack.c.b16 %v1255, %v1254
        %v1269 = vpack.c.b16 %v1257, %v1256
        %v1270 = vpack.c.b16 %v1259, %v1258
        %v1271 = vpack.c.b16 %v1261, %v1260
        %v1272 = vpack.c.b16 %v1263, %v1262
        %v1273 = vpack.c.b16 %v1265, %v1264
        %1282 = vmatprep.subr.bf16.mxu0 0
        %1283 = vmatpush1.bf16.msra.mxu0 %v1266
        %1284 = vmatprep.subr.bf16.mxu0 0
        %1285 = vmatpush1.bf16.msra.mxu0 %v1267
        %1286 = vmatprep.subr.bf16.mxu0 0
        %1287 = vmatpush1.bf16.msra.mxu0 %v1268
        %1288 = vmatprep.subr.bf16.mxu0 0
        %1289 = vmatpush1.bf16.msra.mxu0 %v1269
        %1290 = vmatprep.subr.bf16.mxu0 0
        %1291 = vmatpush1.bf16.msra.mxu0 %v1270
        %1292 = vmatprep.subr.bf16.mxu0 0
        %1293 = vmatpush1.bf16.msra.mxu0 %v1271
        %1294 = vmatprep.subr.bf16.mxu0 0
        %1295 = vmatpush1.bf16.msra.mxu0 %v1272
        %1296 = vmatprep.subr.bf16.mxu0 0
        %1297 = vmatpush1.bf16.msra.mxu0 %v1273
        %1298 = vmatprep.subr.bf16.mxu0 0
        %1299 = vmatpush1.bf16.msra.mxu0 0
        %1300 = vmatprep.subr.bf16.mxu0 0
        %1301 = vmatpush1.bf16.msra.mxu0 0
        %1302 = vmatprep.subr.bf16.mxu0 0
        %1303 = vmatpush1.bf16.msra.mxu0 0
        %1304 = vmatprep.subr.bf16.mxu0 0
        %1305 = vmatpush1.bf16.msra.mxu0 0
        %1306 = vmatprep.subr.bf16.mxu0 0
        %1307 = vmatpush1.bf16.msra.mxu0 0
        %1308 = vmatprep.subr.bf16.mxu0 0
        %1309 = vmatpush1.bf16.msra.mxu0 0
        %1310 = vmatprep.subr.bf16.mxu0 0
        %1311 = vmatpush1.bf16.msra.mxu0 0
        %1312 = vmatprep.subr.bf16.mxu0 0
        %1313 = vmatpush1.bf16.msra.mxu0 0
        %1314 = vmatprep.mubr.bf16.mxu0 0
        %1315 = vmatmul.mubr.bf16.gmra.mrb[0].mxu0 %v1213
        %v1316 = vpop.f32.mrb[0].mxu0
        %v1317 = vadd.f32 %v1233, %v1316
        %v1318 = vpop.f32.mrb[0].mxu0
        %v1319 = vpop.f32.mrb[0].mxu0
        %v1320 = vadd.f32 %v1233, %v1319
        %v1321 = vpop.f32.mrb[0].mxu0
        %1322 = vdwg.mxu0
        %v1323 = vadd.f32 %v670, %v1317
        %v1324 = vadd.f32 %v671, %v1320
        %1325 = vadd.xlane.f32.xlu0 %v1323
        %v1326 = vpop.xlane.xlu0 %1325
        %1327 = vadd.xlane.f32.xlu0 %v1324
        %v1328 = vpop.xlane.xlu0 %1327
        %v1329 = vmul.f32 %v1326, 0.03125
        %v1330 = vmul.f32 %v1328, 0.03125
        %v1331 = vsub.f32 %v1323, %v1329
        %v1332 = vsub.f32 %v1324, %v1330
        %v1333 = vmul.f32 %v1331, %v470
        %v1334 = vmul.f32 %v1332, %v470
        %v1335 = vmul.f32 %v1333, %v1333
        %v1336 = vmul.f32 %v1334, %v1334
        %1337 = vadd.xlane.f32.xlu0 %v1335
        %v1338 = vpop.xlane.xlu0 %1337
        %1339 = vadd.xlane.f32.xlu0 %v1336
        %v1340 = vpop.xlane.xlu0 %1339
        %v1341 = vmul.f32 %v1338, 0.03125
        %v1342 = vmul.f32 %v1340, 0.03125
        %v1343 = vadd.f32 %v1341, 1e-12
        %v1344 = vadd.f32 %v1342, 1e-12
        %v1345 = vrsqrt.pop %v1343
        %v1346 = vrsqrt.pop %v1344
        %v1347 = vmul.f32 %v1333, %v1345
        %v1348 = vmul.f32 %v1334, %v1346
        %v1349 = vlaneseq
        %v1350 = vshrl.u32 %v1349, 7
        %v1351 = vsub.s32 6, %v1350
        %v1352 = vrot.slane %v672, %v1351
        %v1353 = vmul.f32 %v1347, %v1352
        %v1354 = vmul.f32 %v1348, %v1352
        %v1355 = vlaneseq
        %v1356 = vshrl.u32 %v1355, 7
        %v1357 = vsub.s32 7, %v1356
        %v1358 = vrot.slane %v672, %v1357
        %v1359 = vadd.f32 %v1353, %v1358
        %v1360 = vadd.f32 %v1354, %v1358
        %v1361 = vpack.c.bf16 %v1360, %v1359
        %v1362 = vld [vmem:[%s389] sm:$0xf]
        %v1363 = vld [vmem:[%s389 + $0x4] sm:$0xf]
        %v1364 = vld [vmem:[%s389 + $0x8] sm:$0xf]
        %v1365 = vld [vmem:[%s389 + $0xc] sm:$0xf]
        %v1366 = vld [vmem:[%s389 + $0x10] sm:$0xf]
        %v1367 = vld [vmem:[%s389 + $0x14] sm:$0xf]
        %v1368 = vld [vmem:[%s389 + $0x18] sm:$0xf]
        %v1369 = vld [vmem:[%s389 + $0x1c] sm:$0xf]
        %v1370 = vld [vmem:[%s389 + $0x20] sm:$0xf]
        %v1371 = vld [vmem:[%s389 + $0x24] sm:$0xf]
        %v1372 = vld [vmem:[%s389 + $0x28] sm:$0xf]
        %v1373 = vld [vmem:[%s389 + $0x2c] sm:$0xf]
        %v1374 = vld [vmem:[%s389 + $0x30] sm:$0xf]
        %v1375 = vld [vmem:[%s389 + $0x34] sm:$0xf]
        %v1376 = vld [vmem:[%s389 + $0x38] sm:$0xf]
        %v1377 = vld [vmem:[%s389 + $0x3c] sm:$0xf]
        %v1378 = vlaneseq
        %v1379 = vshrl.u32 %v1378, 7
        %v1380 = vsub.s32 0, %v1379
        %v1381 = vrot.slane %v673, %v1380
        %v1398 = vunpack.c.l.b16 %v1362
        %v1399 = vunpack.c.l.b16 %v1363
        %v1400 = vunpack.c.l.b16 %v1364
        %v1401 = vunpack.c.l.b16 %v1365
        %v1402 = vunpack.c.l.b16 %v1366
        %v1403 = vunpack.c.l.b16 %v1367
        %v1404 = vunpack.c.l.b16 %v1368
        %v1405 = vunpack.c.l.b16 %v1369
        %v1406 = vunpack.c.l.b16 %v1370
        %v1407 = vunpack.c.l.b16 %v1371
        %v1408 = vunpack.c.l.b16 %v1372
        %v1409 = vunpack.c.l.b16 %v1373
        %v1410 = vunpack.c.l.b16 %v1374
        %v1411 = vunpack.c.l.b16 %v1375
        %v1412 = vunpack.c.l.b16 %v1376
        %v1413 = vunpack.c.l.b16 %v1377
        %v1414 = vpack.c.b16 %v1399, %v1398
        %v1415 = vpack.c.b16 %v1401, %v1400
        %v1416 = vpack.c.b16 %v1403, %v1402
        %v1417 = vpack.c.b16 %v1405, %v1404
        %v1418 = vpack.c.b16 %v1407, %v1406
        %v1419 = vpack.c.b16 %v1409, %v1408
        %v1420 = vpack.c.b16 %v1411, %v1410
        %v1421 = vpack.c.b16 %v1413, %v1412
        %1430 = vmatprep.subr.bf16.mxu0 0
        %1431 = vmatpush1.bf16.msra.mxu0 %v1414
        %1432 = vmatprep.subr.bf16.mxu0 0
        %1433 = vmatpush1.bf16.msra.mxu0 %v1415
        %1434 = vmatprep.subr.bf16.mxu0 0
        %1435 = vmatpush1.bf16.msra.mxu0 %v1416
        %1436 = vmatprep.subr.bf16.mxu0 0
        %1437 = vmatpush1.bf16.msra.mxu0 %v1417
        %1438 = vmatprep.subr.bf16.mxu0 0
        %1439 = vmatpush1.bf16.msra.mxu0 %v1418
        %1440 = vmatprep.subr.bf16.mxu0 0
        %1441 = vmatpush1.bf16.msra.mxu0 %v1419
        %1442 = vmatprep.subr.bf16.mxu0 0
        %1443 = vmatpush1.bf16.msra.mxu0 %v1420
        %1444 = vmatprep.subr.bf16.mxu0 0
        %1445 = vmatpush1.bf16.msra.mxu0 %v1421
        %1446 = vmatprep.subr.bf16.mxu0 0
        %1447 = vmatpush1.bf16.msra.mxu0 0
        %1448 = vmatprep.subr.bf16.mxu0 0
        %1449 = vmatpush1.bf16.msra.mxu0 0
        %1450 = vmatprep.subr.bf16.mxu0 0
        %1451 = vmatpush1.bf16.msra.mxu0 0
        %1452 = vmatprep.subr.bf16.mxu0 0
        %1453 = vmatpush1.bf16.msra.mxu0 0
        %1454 = vmatprep.subr.bf16.mxu0 0
        %1455 = vmatpush1.bf16.msra.mxu0 0
        %1456 = vmatprep.subr.bf16.mxu0 0
        %1457 = vmatpush1.bf16.msra.mxu0 0
        %1458 = vmatprep.subr.bf16.mxu0 0
        %1459 = vmatpush1.bf16.msra.mxu0 0
        %1460 = vmatprep.subr.bf16.mxu0 0
        %1461 = vmatpush1.bf16.msra.mxu0 0
        %1462 = vmatprep.mubr.bf16.mxu0 0
        %1463 = vmatmul.mubr.bf16.gmra.mrb[0].mxu0 %v1361
        %v1464 = vpop.f32.mrb[0].mxu0
        %v1465 = vadd.f32 %v1381, %v1464
        %v1466 = vpop.f32.mrb[0].mxu0
        %v1467 = vpop.f32.mrb[0].mxu0
        %v1468 = vadd.f32 %v1381, %v1467
        %v1469 = vpop.f32.mrb[0].mxu0
        %1470 = vdwg.mxu0
        %v1471 = vmul.f32 %v1465, 0.5
        %v1472 = vmul.f32 %v1468, 0.5
        %v1473 = vmul.f32 %v1465, 0.044715
        %v1474 = vmul.f32 %v1468, 0.044715
        %v1475 = vmul.f32 %v1473, %v1465
        %v1476 = vmul.f32 %v1474, %v1468
        %v1477 = vmul.f32 %v1475, %v1465
        %v1478 = vmul.f32 %v1476, %v1468
        %v1479 = vadd.f32 %v1465, %v1477
        %v1480 = vadd.f32 %v1468, %v1478
        %v1481 = vmul.f32 %v1479, 0.7978846
        %v1482 = vmul.f32 %v1480, 0.7978846
        %v1483 = vtanh.pop %v1481
        %v1484 = vtanh.pop %v1482
        %v1485 = vadd.f32 %v1483, 1.0
        %v1486 = vadd.f32 %v1484, 1.0
        %v1487 = vmul.f32 %v1471, %v1485
        %v1488 = vmul.f32 %v1472, %v1486
        %v1489 = vpack.c.bf16 %v1488, %v1487
        %v1490 = vld [vmem:[%s398] sm:$0xf]
        %v1491 = vld [vmem:[%s398 + $0x4] sm:$0xf]
        %v1492 = vld [vmem:[%s398 + $0x8] sm:$0xf]
        %v1493 = vld [vmem:[%s398 + $0xc] sm:$0xf]
        %v1494 = vld [vmem:[%s398 + $0x10] sm:$0xf]
        %v1495 = vld [vmem:[%s398 + $0x14] sm:$0xf]
        %v1496 = vld [vmem:[%s398 + $0x18] sm:$0xf]
        %v1497 = vld [vmem:[%s398 + $0x1c] sm:$0xf]
        %v1498 = vld [vmem:[%s398 + $0x20] sm:$0xf]
        %v1499 = vld [vmem:[%s398 + $0x24] sm:$0xf]
        %v1500 = vld [vmem:[%s398 + $0x28] sm:$0xf]
        %v1501 = vld [vmem:[%s398 + $0x2c] sm:$0xf]
        %v1502 = vld [vmem:[%s398 + $0x30] sm:$0xf]
        %v1503 = vld [vmem:[%s398 + $0x34] sm:$0xf]
        %v1504 = vld [vmem:[%s398 + $0x38] sm:$0xf]
        %v1505 = vld [vmem:[%s398 + $0x3c] sm:$0xf]
        %v1506 = vlaneseq
        %v1507 = vshrl.u32 %v1506, 7
        %v1508 = vsub.s32 1, %v1507
        %v1509 = vrot.slane %v673, %v1508
        %v1526 = vunpack.c.l.b16 %v1490
        %v1527 = vunpack.c.l.b16 %v1491
        %v1528 = vunpack.c.l.b16 %v1492
        %v1529 = vunpack.c.l.b16 %v1493
        %v1530 = vunpack.c.l.b16 %v1494
        %v1531 = vunpack.c.l.b16 %v1495
        %v1532 = vunpack.c.l.b16 %v1496
        %v1533 = vunpack.c.l.b16 %v1497
        %v1534 = vunpack.c.l.b16 %v1498
        %v1535 = vunpack.c.l.b16 %v1499
        %v1536 = vunpack.c.l.b16 %v1500
        %v1537 = vunpack.c.l.b16 %v1501
        %v1538 = vunpack.c.l.b16 %v1502
        %v1539 = vunpack.c.l.b16 %v1503
        %v1540 = vunpack.c.l.b16 %v1504
        %v1541 = vunpack.c.l.b16 %v1505
        %v1542 = vpack.c.b16 %v1527, %v1526
        %v1543 = vpack.c.b16 %v1529, %v1528
        %v1544 = vpack.c.b16 %v1531, %v1530
        %v1545 = vpack.c.b16 %v1533, %v1532
        %v1546 = vpack.c.b16 %v1535, %v1534
        %v1547 = vpack.c.b16 %v1537, %v1536
        %v1548 = vpack.c.b16 %v1539, %v1538
        %v1549 = vpack.c.b16 %v1541, %v1540
        %1558 = vmatprep.subr.bf16.mxu0 0
        %1559 = vmatpush1.bf16.msra.mxu0 %v1542
        %1560 = vmatprep.subr.bf16.mxu0 0
        %1561 = vmatpush1.bf16.msra.mxu0 %v1543
        %1562 = vmatprep.subr.bf16.mxu0 0
        %1563 = vmatpush1.bf16.msra.mxu0 %v1544
        %1564 = vmatprep.subr.bf16.mxu0 0
        %1565 = vmatpush1.bf16.msra.mxu0 %v1545
        %1566 = vmatprep.subr.bf16.mxu0 0
        %1567 = vmatpush1.bf16.msra.mxu0 %v1546
        %1568 = vmatprep.subr.bf16.mxu0 0
        %1569 = vmatpush1.bf16.msra.mxu0 %v1547
        %1570 = vmatprep.subr.bf16.mxu0 0
        %1571 = vmatpush1.bf16.msra.mxu0 %v1548
        %1572 = vmatprep.subr.bf16.mxu0 0
        %1573 = vmatpush1.bf16.msra.mxu0 %v1549
        %1574 = vmatprep.subr.bf16.mxu0 0
        %1575 = vmatpush1.bf16.msra.mxu0 0
        %1576 = vmatprep.subr.bf16.mxu0 0
        %1577 = vmatpush1.bf16.msra.mxu0 0
        %1578 = vmatprep.subr.bf16.mxu0 0
        %1579 = vmatpush1.bf16.msra.mxu0 0
        %1580 = vmatprep.subr.bf16.mxu0 0
        %1581 = vmatpush1.bf16.msra.mxu0 0
        %1582 = vmatprep.subr.bf16.mxu0 0
        %1583 = vmatpush1.bf16.msra.mxu0 0
        %1584 = vmatprep.subr.bf16.mxu0 0
        %1585 = vmatpush1.bf16.msra.mxu0 0
        %1586 = vmatprep.subr.bf16.mxu0 0
        %1587 = vmatpush1.bf16.msra.mxu0 0
        %1588 = vmatprep.subr.bf16.mxu0 0
        %1589 = vmatpush1.bf16.msra.mxu0 0
        %1590 = vmatprep.mubr.bf16.mxu0 0
        %1591 = vmatmul.mubr.bf16.gmra.mrb[0].mxu0 %v1489
        %v1592 = vpop.f32.mrb[0].mxu0
        %v1593 = vadd.f32 %v1509, %v1592
        %v1594 = vpop.f32.mrb[0].mxu0
        %v1595 = vpop.f32.mrb[0].mxu0
        %v1596 = vadd.f32 %v1509, %v1595
        %v1597 = vpop.f32.mrb[0].mxu0
        %1598 = vdwg.mxu0
        %v1599 = vadd.f32 %v1323, %v1593
        %v1600 = vadd.f32 %v1324, %v1596
        %1601 = vst [vmem:[#allocation2] sm:$0xff] %v1599
        %1602 = vst [vmem:[#allocation2 + $0x8] sm:$0xff] %v1600
        %p1603 = scmp.eq.s32.totalorder %s27, 1
        // Predicated region
        $region73: #{dino_forward.1} parent=59 // pred_check
          %p1604 = pneg %p1603
        $region74: #{dino_forward.1} parent=59 // pred_check_branch
          %1606 = sbr.rel (%p1604) target = $region76
        $region75: #{dino_forward.1} parent=59 // pred_region
          %v1607 = vld [vmem:[%s9] sm:$0x3]
          %1608 = vadd.xlane.f32.xlu0 %v1599
          %v1609 = vpop.xlane.xlu0 %1608
          %1610 = vadd.xlane.f32.xlu0 %v1600
          %v1611 = vpop.xlane.xlu0 %1610
          %v1612 = vmul.f32 %v1609, 0.03125
          %v1613 = vmul.f32 %v1611, 0.03125
          %v1614 = vsub.f32 %v1599, %v1612
          %v1615 = vsub.f32 %v1600, %v1613
          %v1616 = vmul.f32 %v1614, %v470
          %v1617 = vmul.f32 %v1615, %v470
          %v1618 = vmul.f32 %v1616, %v1616
          %v1619 = vmul.f32 %v1617, %v1617
          %1620 = vadd.xlane.f32.xlu0 %v1618
          %v1621 = vpop.xlane.xlu0 %1620
          %1622 = vadd.xlane.f32.xlu0 %v1619
          %v1623 = vpop.xlane.xlu0 %1622
          %v1624 = vmul.f32 %v1621, 0.03125
          %v1625 = vmul.f32 %v1623, 0.03125
          %v1626 = vadd.f32 %v1624, 1e-12
          %v1627 = vadd.f32 %v1625, 1e-12
          %v1628 = vrsqrt.pop %v1626
          %v1629 = vrsqrt.pop %v1627
          %v1630 = vmul.f32 %v1616, %v1628
          %v1631 = vmul.f32 %v1617, %v1629
          %v1632 = vlaneseq
          %v1633 = vshrl.u32 %v1632, 7
          %v1634 = vsub.s32 0, %v1633
          %v1635 = vrot.slane %v1607, %v1634
          %v1636 = vmul.f32 %v1630, %v1635
          %v1637 = vmul.f32 %v1631, %v1635
          %v1638 = vlaneseq
          %v1639 = vshrl.u32 %v1638, 7
          %v1640 = vsub.s32 1, %v1639
          %v1641 = vrot.slane %v1607, %v1640
          %v1642 = vadd.f32 %v1636, %v1641
          %v1643 = vadd.f32 %v1637, %v1641
          %1644 = vst [vmem:[%s10] sm:$0xff] %v1642
          %1645 = vst [vmem:[%s10 + $0x8] sm:$0xff] %v1643
        $region76: #{dino_forward.1} parent=59 // pred_fallthru
          _
        // Predicated region
        $region77: #{dino_forward.1} parent=59 // pred_check
          %p1646 = pneg %p275
        $region78: #{dino_forward.1} parent=59 // pred_check_branch
          %1648 = sbr.rel (%p1646) target = $region80
        $region79: #{dino_forward.1} parent=59 // pred_region
          _
        $region80: #{dino_forward.1} parent=59 // pred_fallthru
          _
        // Predicated region
        $region81: #{dino_forward.1} parent=59 // pred_check
          %p1649 = pneg %p275
        $region82: #{dino_forward.1} parent=59 // pred_check_branch
          %1651 = sbr.rel (%p1649) target = $region84
        $region83: #{dino_forward.1} parent=59 // pred_region
          _
        $region84: #{dino_forward.1} parent=59 // pred_fallthru
          _
      $region60: #{dino_forward.1} parent=5 // pred_fallthru
        _
      %p1652 = scmp.le.s32.totalorder 2, %s22
      // Predicated region
      $region85: #{dino_forward.1} parent=5 // pred_check
        %p1653 = pneg %p1652
      $region86: #{dino_forward.1} parent=5 // pred_check_branch
        %1655 = sbr.rel (%p1653) target = $region88
      $region87: #{dino_forward.1} parent=5 // pred_region
        %s1656 = ssub.s32 %s22, 2
      $region88: #{dino_forward.1} parent=5 // pred_fallthru
        _
    $region6: #{dino_forward.1} parent=1 // loop_footer
      %s26 = sadd.s32 1, %s22
    $region7: #{dino_forward.1} parent=1 // loop_footer_branch
      %21 = sbr.rel target = $region3
    $region8: #{dino_forward.1} parent=1 // loop_exit
      _
    %1657 = vsyncpa [#allocation4], 1
    %s1658 = scalar_lea.sflag [#allocation4], 1
    %1659 = vsyncpa %s1658, 1
    %1660 = vsyncpa [#allocation6], 1
    %s1661 = scalar_lea.sflag [#allocation6], 1
    %1662 = vsyncpa %s1661, 1

</llo_original>
